<compile_context>
chip_gen: v6e
topology: v6e:2x2x1
jax: 0.10.0
libtpu: 0.0.40
codegen_flags: <defaults>
</compile_context>

<pallas_src>
import functools

import jax
import jax.numpy as jnp
from jax.experimental import pallas as pl
from jax.experimental.pallas import tpu as pltpu


def _leaky_relu(x, slope=0.2):
    return jnp.where(x > 0, x, slope * x)


def _round_up(x, m):
    return ((x + m - 1) // m) * m


def discriminator_kernel(x_ref, w1_ref, b1_ref, w2_ref, b2_ref, w3_ref, b3_ref, o_ref):
    f32 = jnp.float32

    # Feed the loaded tile straight into the MXU (no unconditional upcast);
    # accumulate in f32, keep bias add + LeakyReLU in f32.
    x = x_ref[...]
    h1 = jnp.dot(x, w1_ref[...], preferred_element_type=f32) + b1_ref[...].astype(f32)
    h1 = _leaky_relu(h1)

    h1 = h1.astype(w2_ref.dtype)  # no-op in the f32 path; bf16 feed in the bf16 path
    h2 = jnp.dot(h1, w2_ref[...], preferred_element_type=f32) + b2_ref[...].astype(f32)
    h2 = _leaky_relu(h2)

    h2 = h2.astype(w3_ref.dtype)
    out = jnp.dot(h2, w3_ref[...], preferred_element_type=f32) + b3_ref[0, 0].astype(f32)
    o_ref[...] = out.astype(o_ref.dtype)


def _choose_block_b(B, D, H1, H2, esize):
    """Pick a batch tile: as fat as possible, >=2 grid steps (v7x megacore),
    multiple of 8 (sublane), under a conservative VMEM budget."""
    if B <= 8:
        return 8
    target = min(2048, _round_up(B, 8))
    # Keep at least 2 grid steps so the parallel axis can be sharded across 2 TCs.
    target = min(target, _round_up(pl.cdiv(B, 2), 8))
    # VMEM budget conservative enough for v5e's 16 MiB scoped default and v7x's
    # 64 MiB physical VMEM, so no vmem_limit_bytes override is needed.
    budget = 12 << 20
    weight_bytes = 2 * esize * (D * H1 + H1 * H2 + H2) + 2 * 4 * (H1 + H2 + 1)
    per_row = 2 * D * esize + 4 * (H1 + H2 + 1) + 4 * D  # dbl-buffered x + f32 temps
    max_rows = max(8, (budget - weight_bytes) // per_row)
    target = min(target, (max_rows // 8) * 8)
    return max(8, int(target))


def _forward_xla(x, p):
    """Plain-XLA path for tiny batches where pallas_call fixed cost dominates."""
    f32 = jnp.float32
    w1, w2, w3 = p["w1"], p["w2"], p["w3"]
    x = x.astype(w1.dtype)
    h1 = _leaky_relu(jnp.dot(x, w1, preferred_element_type=f32) + p["b1"].astype(f32))
    h2 = _leaky_relu(jnp.dot(h1.astype(w2.dtype), w2, preferred_element_type=f32)
                     + p["b2"].astype(f32))
    return jnp.dot(h2.astype(w3.dtype), w3, preferred_element_type=f32) + p["b3"].astype(f32)


@functools.partial(jax.jit, static_argnames=("block_b", "min_pallas_batch"))
def discriminator_forward(x, params, block_b=None, min_pallas_batch=64):
    """x: [B, input_dim]. params: dict of w1,b1,w2,b2,w3,b3 ([in,out] weights).

    Returns f32 critic scores of shape [B, 1].
    """
    B, D = x.shape
    w1, b1 = params["w1"], params["b1"]   # [D, H1], [1, H1] (b* kept f32)
    w2, b2 = params["w2"], params["b2"]   # [H1, H2], [1, H2]
    w3, b3 = params["w3"], params["b3"]   # [H2, 1],  [1, 1]
    H1 = w1.shape[1]
    H2 = w2.shape[1]

    # For tiny batches the pallas_call fixed cost exceeds the work: let XLA fuse it.
    if B < min_pallas_batch:
        return _forward_xla(x, params)

    # Match activation dtype to the weight dtype so the MXU consumes it directly.
    if x.dtype != w1.dtype:
        x = x.astype(w1.dtype)
    esize = jnp.dtype(x.dtype).itemsize

    if block_b is None:
        block_b = _choose_block_b(B, D, H1, H2, esize)
    grid = (pl.cdiv(B, block_b),)

    flops = 2 * B * (D * H1 + H1 * H2 + H2)
    bytes_accessed = (
        B * D * esize
        + (D * H1 + H1 * H2 + H2) * jnp.dtype(w1.dtype).itemsize
        + (H1 + H2 + 1) * 4
        + B * 1 * 4
    )

    return pl.pallas_call(
        discriminator_kernel,
        out_shape=jax.ShapeDtypeStruct((B, 1), jnp.float32),
        grid_spec=pltpu.PrefetchScalarGridSpec(
            num_scalar_prefetch=0,
            grid=grid,
            in_specs=[
                pl.BlockSpec((block_b, D), lambda i: (i, 0)),   # x tile over batch
                # Weights/biases are grid-invariant and tiny; default buffering is fine
                # at these sizes (use pl.Buffered(1) only if input_dim grows large).
                pl.BlockSpec((D, H1), lambda i: (0, 0)),        # w1 (full, resident)
                pl.BlockSpec((1, H1), lambda i: (0, 0)),        # b1 (f32)
                pl.BlockSpec((H1, H2), lambda i: (0, 0)),       # w2
                pl.BlockSpec((1, H2), lambda i: (0, 0)),        # b2 (f32)
                pl.BlockSpec((H2, 1), lambda i: (0, 0)),        # w3
                pl.BlockSpec(memory_space=pltpu.MemorySpace.SMEM),  # b3 scalar in SMEM
            ],
            out_specs=pl.BlockSpec((block_b, 1), lambda i: (i, 0)),
        ),
        compiler_params=pltpu.CompilerParams(
            dimension_semantics=("parallel",),
        ),
        cost_estimate=pl.CostEstimate(
            flops=int(flops), transcendentals=0, bytes_accessed=int(bytes_accessed)
        ),
    )(x, w1, b1, w2, b2, w3, b3)


def init_discriminator_params(key, input_dim, dtype=jnp.float32):
    """Deterministic init mimicking PyTorch nn.Linear default:
    U(-1/sqrt(fan_in), 1/sqrt(fan_in)) for both weights and biases."""
    h1 = 2 * input_dim // 3
    h2 = input_dim // 3

    def linear_init(k, fan_in, fan_out):
        kw, kb = jax.random.split(k)
        bound = 1.0 / jnp.sqrt(fan_in)
        w = jax.random.uniform(kw, (fan_in, fan_out), dtype, -bound, bound)
        b = jax.random.uniform(kb, (1, fan_out), dtype, -bound, bound)
        return w, b

    k1, k2, k3 = jax.random.split(key, 3)
    w1, b1 = linear_init(k1, input_dim, h1)
    w2, b2 = linear_init(k2, h1, h2)
    w3, b3 = linear_init(k3, h2, 1)
    return {"w1": w1, "b1": b1, "w2": w2, "b2": b2, "w3": w3, "b3": b3}


def cast_weights_bf16(params):
    """bf16 weights (the mem-bound streams); biases stay f32 so the bias add and
    LeakyReLU run on the f32 VPU path (v5e has no bf16 VPU)."""
    out = dict(params)
    for k in ("w1", "w2", "w3"):
        out[k] = params[k].astype(jnp.bfloat16)
    return out


def _reference_forward(x, p, compute_dtype=jnp.float32):
    """Pure-JAX reference; compute_dtype mimics the kernel's MXU input precision."""
    f32 = jnp.float32

    def dot(a, w):
        return jnp.dot(a.astype(compute_dtype).astype(f32),
                       w.astype(compute_dtype).astype(f32))

    h1 = _leaky_relu(dot(x, p["w1"]) + p["b1"].astype(f32))
    h2 = _leaky_relu(dot(h1, p["w2"]) + p["b2"].astype(f32))
    return dot(h2, p["w3"]) + p["b3"].astype(f32)


if __name__ == "__main__":
    key = jax.random.PRNGKey(0)
    k_param, k_x = jax.random.split(key)

    batch = 512       # big enough that the Pallas path runs with a >=2-step grid
    input_dim = 48    # -> hidden sizes 32 and 16

    params = init_discriminator_params(k_param, input_dim)
    x = jax.random.normal(k_x, (batch, input_dim), dtype=jnp.float32)

    # f32 path through the Pallas kernel.
    out = jax.block_until_ready(discriminator_forward(x, params))
    ref = _reference_forward(x, params)
    assert out.shape == (batch, 1), out.shape
    assert jnp.allclose(out, ref, atol=1e-4, rtol=1e-4)

    # bf16 weights/activations (f32 accumulation, f32 bias + LeakyReLU) path.
    params_bf16 = cast_weights_bf16(params)
    x_bf16 = x.astype(jnp.bfloat16)
    out_bf16 = jax.block_until_ready(discriminator_forward(x_bf16, params_bf16))
    ref_bf16 = _reference_forward(x, params, compute_dtype=jnp.bfloat16)
    assert out_bf16.shape == (batch, 1), out_bf16.shape
    assert jnp.allclose(out_bf16, ref_bf16, atol=2e-2, rtol=2e-2)

    # Tiny batch falls back to plain XLA (pallas fixed cost would dominate there).
    out_small = jax.block_until_ready(discriminator_forward(x[:8], params))
    assert jnp.allclose(out_small, ref[:8], atol=1e-4, rtol=1e-4)

    print("KERNEL_OK")
</pallas_src>

<mosaic_0001>
module attributes {stable_mosaic.version = 11 : i64} {
  func.func @discriminator_kernel(%arg0: i32, %arg1: memref<256x48xf32, #tpu.memory_space<vmem>>, %arg2: memref<48x32xf32, #tpu.memory_space<vmem>>, %arg3: memref<1x32xf32, #tpu.memory_space<vmem>>, %arg4: memref<32x16xf32, #tpu.memory_space<vmem>>, %arg5: memref<1x16xf32, #tpu.memory_space<vmem>>, %arg6: memref<16x1xf32, #tpu.memory_space<vmem>>, %arg7: memref<1x1xf32, #tpu.memory_space<smem>>, %arg8: memref<256x1xf32, #tpu.memory_space<vmem>>) attributes {dimension_semantics = [#tpu.dimension_semantics<parallel>], iteration_bounds = array<i64: 2>, scalar_prefetch = 0 : i64, scratch_operands = 0 : i64, tpu.core_type = #tpu.core_type<tc>, window_params = [{transform_indices = @transform_0, window_bounds = array<i64: 256, 48>}, {pipeline_mode = #tpu.pipeline_mode<synchronous>, transform_indices = @transform_1, window_bounds = array<i64: 48, 32>}, {pipeline_mode = #tpu.pipeline_mode<synchronous>, transform_indices = @transform_2, window_bounds = array<i64: 1, 32>}, {pipeline_mode = #tpu.pipeline_mode<synchronous>, transform_indices = @transform_3, window_bounds = array<i64: 32, 16>}, {pipeline_mode = #tpu.pipeline_mode<synchronous>, transform_indices = @transform_4, window_bounds = array<i64: 1, 16>}, {pipeline_mode = #tpu.pipeline_mode<synchronous>, transform_indices = @transform_5, window_bounds = array<i64: 16, 1>}, {transform_indices = @transform_6, window_bounds = array<i64: 1, 1>}, {transform_indices = @transform_7, window_bounds = array<i64: 256, 1>}]} {
    %c0 = arith.constant 0 : index
    %c0_0 = arith.constant 0 : index
    %0 = vector.load %arg1[%c0, %c0_0] : memref<256x48xf32, #tpu.memory_space<vmem>>, vector<256x48xf32>
    %c0_1 = arith.constant 0 : index
    %c0_2 = arith.constant 0 : index
    %1 = vector.load %arg2[%c0_1, %c0_2] : memref<48x32xf32, #tpu.memory_space<vmem>>, vector<48x32xf32>
    %cst = arith.constant dense<0.000000e+00> : vector<256x32xf32>
    %2 = tpu.matmul %0, %1, %cst {dimension_numbers = #tpu.dot_dimension_numbers<[1], [0], [0], [1], [0, 0, 1, 1], [], []>} : vector<256x48xf32>, vector<48x32xf32>, vector<256x32xf32> -> vector<256x32xf32>
    %c0_3 = arith.constant 0 : index
    %c0_4 = arith.constant 0 : index
    %3 = vector.load %arg3[%c0_3, %c0_4] : memref<1x32xf32, #tpu.memory_space<vmem>>, vector<1x32xf32>
    %4 = vector.broadcast %3 : vector<1x32xf32> to vector<256x32xf32>
    %5 = arith.addf %2, %4 : vector<256x32xf32>
    %cst_5 = arith.constant 0.000000e+00 : f32
    %6 = vector.broadcast %cst_5 : f32 to vector<256x32xf32>
    %7 = arith.cmpf ogt, %5, %6 : vector<256x32xf32>
    %cst_6 = arith.constant 2.000000e-01 : f32
    %8 = vector.broadcast %cst_6 : f32 to vector<256x32xf32>
    %9 = arith.mulf %8, %5 : vector<256x32xf32>
    %10 = arith.select %7, %5, %9 : vector<256x32xi1>, vector<256x32xf32>
    %c0_7 = arith.constant 0 : index
    %c0_8 = arith.constant 0 : index
    %11 = vector.load %arg4[%c0_7, %c0_8] : memref<32x16xf32, #tpu.memory_space<vmem>>, vector<32x16xf32>
    %cst_9 = arith.constant dense<0.000000e+00> : vector<256x16xf32>
    %12 = tpu.matmul %10, %11, %cst_9 {dimension_numbers = #tpu.dot_dimension_numbers<[1], [0], [0], [1], [0, 0, 1, 1], [], []>} : vector<256x32xf32>, vector<32x16xf32>, vector<256x16xf32> -> vector<256x16xf32>
    %c0_10 = arith.constant 0 : index
    %c0_11 = arith.constant 0 : index
    %13 = vector.load %arg5[%c0_10, %c0_11] : memref<1x16xf32, #tpu.memory_space<vmem>>, vector<1x16xf32>
    %14 = vector.broadcast %13 : vector<1x16xf32> to vector<256x16xf32>
    %15 = arith.addf %12, %14 : vector<256x16xf32>
    %cst_12 = arith.constant 0.000000e+00 : f32
    %16 = vector.broadcast %cst_12 : f32 to vector<256x16xf32>
    %17 = arith.cmpf ogt, %15, %16 : vector<256x16xf32>
    %cst_13 = arith.constant 2.000000e-01 : f32
    %18 = vector.broadcast %cst_13 : f32 to vector<256x16xf32>
    %19 = arith.mulf %18, %15 : vector<256x16xf32>
    %20 = arith.select %17, %15, %19 : vector<256x16xi1>, vector<256x16xf32>
    %c0_14 = arith.constant 0 : index
    %c0_15 = arith.constant 0 : index
    %21 = vector.load %arg6[%c0_14, %c0_15] : memref<16x1xf32, #tpu.memory_space<vmem>>, vector<16x1xf32>
    %cst_16 = arith.constant dense<0.000000e+00> : vector<256x1xf32>
    %22 = tpu.matmul %20, %21, %cst_16 {dimension_numbers = #tpu.dot_dimension_numbers<[1], [0], [0], [1], [0, 0, 1, 1], [], []>} : vector<256x16xf32>, vector<16x1xf32>, vector<256x1xf32> -> vector<256x1xf32>
    %c0_17 = arith.constant 0 : index
    %c0_18 = arith.constant 0 : index
    %23 = memref.load %arg7[%c0_17, %c0_18] : memref<1x1xf32, #tpu.memory_space<smem>>
    %24 = vector.broadcast %23 : f32 to vector<256x1xf32>
    %25 = arith.addf %22, %24 : vector<256x1xf32>
    %c0_19 = arith.constant 0 : index
    %c0_20 = arith.constant 0 : index
    %26 = vector.load %arg8[%c0_19, %c0_20] : memref<256x1xf32, #tpu.memory_space<vmem>>, vector<256x1xf32>
    tpu.vector_store %arg8[%c0_19, %c0_20], %25 {strides = array<i32>} : memref<256x1xf32, #tpu.memory_space<vmem>>, vector<256x1xf32>,
    return
  }
  func.func @transform_0(%arg0: i32) -> (i32, i32) {
    %c0_i32 = arith.constant 0 : i32
    %c0_i32_0 = arith.constant 0 : i32
    return %arg0, %c0_i32 : i32, i32
  }
  func.func @transform_1(%arg0: i32) -> (i32, i32) {
    %c0_i32 = arith.constant 0 : i32
    %c0_i32_0 = arith.constant 0 : i32
    %c0_i32_1 = arith.constant 0 : i32
    return %c0_i32, %c0_i32_0 : i32, i32
  }
  func.func @transform_2(%arg0: i32) -> (i32, i32) {
    %c0_i32 = arith.constant 0 : i32
    %c0_i32_0 = arith.constant 0 : i32
    %c0_i32_1 = arith.constant 0 : i32
    return %c0_i32, %c0_i32_0 : i32, i32
  }
  func.func @transform_3(%arg0: i32) -> (i32, i32) {
    %c0_i32 = arith.constant 0 : i32
    %c0_i32_0 = arith.constant 0 : i32
    %c0_i32_1 = arith.constant 0 : i32
    return %c0_i32, %c0_i32_0 : i32, i32
  }
  func.func @transform_4(%arg0: i32) -> (i32, i32) {
    %c0_i32 = arith.constant 0 : i32
    %c0_i32_0 = arith.constant 0 : i32
    %c0_i32_1 = arith.constant 0 : i32
    return %c0_i32, %c0_i32_0 : i32, i32
  }
  func.func @transform_5(%arg0: i32) -> (i32, i32) {
    %c0_i32 = arith.constant 0 : i32
    %c0_i32_0 = arith.constant 0 : i32
    %c0_i32_1 = arith.constant 0 : i32
    return %c0_i32, %c0_i32_0 : i32, i32
  }
  func.func @transform_6(%arg0: i32) -> (i32, i32) {
    %c0_i32 = arith.constant 0 : i32
    %c0_i32_0 = arith.constant 0 : i32
    %c0_i32_1 = arith.constant 0 : i32
    return %c0_i32, %c0_i32_0 : i32, i32
  }
  func.func @transform_7(%arg0: i32) -> (i32, i32) {
    %c0_i32 = arith.constant 0 : i32
    %c0_i32_0 = arith.constant 0 : i32
    return %arg0, %c0_i32 : i32, i32
  }
}

</mosaic_0001>

<llo_original>
// kernel: discriminator_forward.1
$region0: #{discriminator_forward.1}
  #allocation0 [shape = 'u32[]', space=smem, size = 0x4, offset = 0x4, fixed_abs, tag = 'smem constant byte address 0x4 - core index']
  #allocation1 [shape = 'u32[144,128]{1,0:T(1,128)}', space=vmem, size = 0x12000, scoped, tag = 'internal scratch']
  #allocation2 [shape = 'f32[1,1]{1,0:T(1,128)S(6)}', space=smem, size = 0x200, scoped, tag = 'scoped memory for discriminator_forward.1']
  %s0 = inlined_call_operand.vmem [shape: f32[512,48], index: 0, kind: input, shape index: {}]
  %s1 = inlined_call_operand.vmem [shape: f32[48,32], index: 1, kind: input, shape index: {}]
  %s2 = inlined_call_operand.vmem [shape: f32[1,32], index: 2, kind: input, shape index: {}]
  %s3 = inlined_call_operand.vmem [shape: f32[32,16], index: 3, kind: input, shape index: {}]
  %s4 = inlined_call_operand.vmem [shape: f32[1,16], index: 4, kind: input, shape index: {}]
  %s5 = inlined_call_operand.vmem [shape: f32[16,1], index: 5, kind: input, shape index: {}]
  %s6 = inlined_call_operand.<no memory space> [shape: f32[1,1], index: 6, kind: input, shape index: {}]
  %s7 = inlined_call_operand.vmem [shape: f32[512,1], index: 7, kind: output, shape index: {}]
  %s8 = sld [smem:[#allocation0]]
  $region61: #{discriminator_forward.1} parent=0
    _
  %s10 = ssub.s32 1, %s8
  %s11 = scalar_select 0, %s10, %s8
  %12 = sst [smem:[#allocation2]] %s6
  loop: start=0, step=1, limit=4
  $region2: #{discriminator_forward.1} parent=0 // loop_pre_header
    _
  $region3: #{discriminator_forward.1} parent=0 // loop_header
    %s14 = sphi 0, %s18
    %p15 = scmp.ge.s32.totalorder %s14, 4
    %s24 = sphi 0, %s26
    %s27 = sphi 0, %s24
    %s28 = sphi 0, %s27
    %s44 = sphi 0, %s28
    %s48 = sphi 0, %s48
    %s50 = sphi 0, %s48
    %s51 = sphi 0, %s50
    %s65 = sphi 0, %s51
    %s69 = sphi 0, %s69
    %s71 = sphi 0, %s69
    %s72 = sphi 0, %s71
    %s86 = sphi 0, %s72
    %s90 = sphi 0, %s90
    %s92 = sphi 0, %s90
    %s93 = sphi 0, %s92
    %s107 = sphi 0, %s93
    %s111 = sphi 0, %s111
    %s113 = sphi 0, %s111
    %s114 = sphi 0, %s113
    %s128 = sphi 0, %s114
    %s132 = sphi 0, %s132
    %s134 = sphi 0, %s132
    %s135 = sphi 0, %s134
    %s149 = sphi 0, %s135
    %s153 = sphi 0, %s153
    %s155 = sphi 0, %s153
    %s156 = sphi 0, %s155
    %s170 = sphi 0, %s156
    %s176 = sphi 0, %s178
    %s179 = sphi 0, %s176
    %s180 = sphi 0, %s179
    %s196 = sphi 0, %s180
  $region4: #{discriminator_forward.1} parent=0 // loop_header_branch
    %17 = sbr.rel (%p15) target = $region8
  $region5: #{discriminator_forward.1} parent=0 // loop_body
    %s19 = ssub.s32 %s14, 1
    %s20 = ssub.s32 %s14, 2
    %s21 = sadd.s32 %s14, 1
    %s22 = ssub.s32 %s14, %s21
    %p23 = scmp.eq.s32.totalorder %s22, 0
    %s25 = sadd.s32 %s24, 1
    %s26 = scalar_select %p23, %s24, %s25
    %p29 = pneg %p23
    %p30 = scmp.eq.s32.totalorder %s14, 1
    %p31 = por %p29, %p30
    %p32 = scmp.ne.s32.totalorder %s24, %s27
    %p33 = scmp.eq.s32.totalorder %s14, 0
    %p34 = por %p32, %p33
    %p35 = scmp.ne.s32.totalorder %s24, %s27
    %p36 = scmp.eq.s32.totalorder %s19, 1
    %p37 = por %p35, %p36
    %p38 = scmp.ne.s32.totalorder %s27, %s28
    %p39 = scmp.eq.s32.totalorder %s19, 0
    %p40 = por %p38, %p39
    %p41 = scmp.ne.s32.totalorder %s27, %s28
    %p42 = scmp.eq.s32.totalorder %s20, 1
    %p43 = por %p41, %p42
    %p45 = scmp.ne.s32.totalorder %s28, %s44
    %p46 = scmp.eq.s32.totalorder %s20, 0
    %p47 = por %p45, %p46
    %s49 = sadd.s32 %s48, 1
    %p52 = scmp.eq.s32.totalorder %s14, 1
    %p53 = scmp.ne.s32.totalorder %s48, %s50
    %p54 = scmp.eq.s32.totalorder %s14, 0
    %p55 = por %p53, %p54
    %p56 = scmp.ne.s32.totalorder %s48, %s50
    %p57 = scmp.eq.s32.totalorder %s19, 1
    %p58 = por %p56, %p57
    %p59 = scmp.ne.s32.totalorder %s50, %s51
    %p60 = scmp.eq.s32.totalorder %s19, 0
    %p61 = por %p59, %p60
    %p62 = scmp.ne.s32.totalorder %s50, %s51
    %p63 = scmp.eq.s32.totalorder %s20, 1
    %p64 = por %p62, %p63
    %p66 = scmp.ne.s32.totalorder %s51, %s65
    %p67 = scmp.eq.s32.totalorder %s20, 0
    %p68 = por %p66, %p67
    %s70 = sadd.s32 %s69, 1
    %p73 = scmp.eq.s32.totalorder %s14, 1
    %p74 = scmp.ne.s32.totalorder %s69, %s71
    %p75 = scmp.eq.s32.totalorder %s14, 0
    %p76 = por %p74, %p75
    %p77 = scmp.ne.s32.totalorder %s69, %s71
    %p78 = scmp.eq.s32.totalorder %s19, 1
    %p79 = por %p77, %p78
    %p80 = scmp.ne.s32.totalorder %s71, %s72
    %p81 = scmp.eq.s32.totalorder %s19, 0
    %p82 = por %p80, %p81
    %p83 = scmp.ne.s32.totalorder %s71, %s72
    %p84 = scmp.eq.s32.totalorder %s20, 1
    %p85 = por %p83, %p84
    %p87 = scmp.ne.s32.totalorder %s72, %s86
    %p88 = scmp.eq.s32.totalorder %s20, 0
    %p89 = por %p87, %p88
    %s91 = sadd.s32 %s90, 1
    %p94 = scmp.eq.s32.totalorder %s14, 1
    %p95 = scmp.ne.s32.totalorder %s90, %s92
    %p96 = scmp.eq.s32.totalorder %s14, 0
    %p97 = por %p95, %p96
    %p98 = scmp.ne.s32.totalorder %s90, %s92
    %p99 = scmp.eq.s32.totalorder %s19, 1
    %p100 = por %p98, %p99
    %p101 = scmp.ne.s32.totalorder %s92, %s93
    %p102 = scmp.eq.s32.totalorder %s19, 0
    %p103 = por %p101, %p102
    %p104 = scmp.ne.s32.totalorder %s92, %s93
    %p105 = scmp.eq.s32.totalorder %s20, 1
    %p106 = por %p104, %p105
    %p108 = scmp.ne.s32.totalorder %s93, %s107
    %p109 = scmp.eq.s32.totalorder %s20, 0
    %p110 = por %p108, %p109
    %s112 = sadd.s32 %s111, 1
    %p115 = scmp.eq.s32.totalorder %s14, 1
    %p116 = scmp.ne.s32.totalorder %s111, %s113
    %p117 = scmp.eq.s32.totalorder %s14, 0
    %p118 = por %p116, %p117
    %p119 = scmp.ne.s32.totalorder %s111, %s113
    %p120 = scmp.eq.s32.totalorder %s19, 1
    %p121 = por %p119, %p120
    %p122 = scmp.ne.s32.totalorder %s113, %s114
    %p123 = scmp.eq.s32.totalorder %s19, 0
    %p124 = por %p122, %p123
    %p125 = scmp.ne.s32.totalorder %s113, %s114
    %p126 = scmp.eq.s32.totalorder %s20, 1
    %p127 = por %p125, %p126
    %p129 = scmp.ne.s32.totalorder %s114, %s128
    %p130 = scmp.eq.s32.totalorder %s20, 0
    %p131 = por %p129, %p130
    %s133 = sadd.s32 %s132, 1
    %p136 = scmp.eq.s32.totalorder %s14, 1
    %p137 = scmp.ne.s32.totalorder %s132, %s134
    %p138 = scmp.eq.s32.totalorder %s14, 0
    %p139 = por %p137, %p138
    %p140 = scmp.ne.s32.totalorder %s132, %s134
    %p141 = scmp.eq.s32.totalorder %s19, 1
    %p142 = por %p140, %p141
    %p143 = scmp.ne.s32.totalorder %s134, %s135
    %p144 = scmp.eq.s32.totalorder %s19, 0
    %p145 = por %p143, %p144
    %p146 = scmp.ne.s32.totalorder %s134, %s135
    %p147 = scmp.eq.s32.totalorder %s20, 1
    %p148 = por %p146, %p147
    %p150 = scmp.ne.s32.totalorder %s135, %s149
    %p151 = scmp.eq.s32.totalorder %s20, 0
    %p152 = por %p150, %p151
    %s154 = sadd.s32 %s153, 1
    %p157 = scmp.eq.s32.totalorder %s14, 1
    %p158 = scmp.ne.s32.totalorder %s153, %s155
    %p159 = scmp.eq.s32.totalorder %s14, 0
    %p160 = por %p158, %p159
    %p161 = scmp.ne.s32.totalorder %s153, %s155
    %p162 = scmp.eq.s32.totalorder %s19, 1
    %p163 = por %p161, %p162
    %p164 = scmp.ne.s32.totalorder %s155, %s156
    %p165 = scmp.eq.s32.totalorder %s19, 0
    %p166 = por %p164, %p165
    %p167 = scmp.ne.s32.totalorder %s155, %s156
    %p168 = scmp.eq.s32.totalorder %s20, 1
    %p169 = por %p167, %p168
    %p171 = scmp.ne.s32.totalorder %s156, %s170
    %p172 = scmp.eq.s32.totalorder %s20, 0
    %p173 = por %p171, %p172
    %s174 = ssub.s32 %s14, %s21
    %p175 = scmp.eq.s32.totalorder %s174, 0
    %s177 = sadd.s32 %s176, 1
    %s178 = scalar_select %p175, %s176, %s177
    %p181 = pneg %p175
    %p182 = scmp.eq.s32.totalorder %s14, 1
    %p183 = por %p181, %p182
    %p184 = scmp.ne.s32.totalorder %s176, %s179
    %p185 = scmp.eq.s32.totalorder %s14, 0
    %p186 = por %p184, %p185
    %p187 = scmp.ne.s32.totalorder %s176, %s179
    %p188 = scmp.eq.s32.totalorder %s19, 1
    %p189 = por %p187, %p188
    %p190 = scmp.ne.s32.totalorder %s179, %s180
    %p191 = scmp.eq.s32.totalorder %s19, 0
    %p192 = por %p190, %p191
    %p193 = scmp.ne.s32.totalorder %s179, %s180
    %p194 = scmp.eq.s32.totalorder %s20, 1
    %p195 = por %p193, %p194
    %p197 = scmp.ne.s32.totalorder %s180, %s196
    %p198 = scmp.eq.s32.totalorder %s20, 0
    %p199 = por %p197, %p198
    %p200 = scmp.le.s32.totalorder 1, %s14
    %p201 = scmp.lt.s32.totalorder %s14, 3
    %p202 = pnand %p200, %p201
    %p203 = pneg %p202
    // Predicated region
    $region9: #{discriminator_forward.1} parent=5 // pred_check
      _
    $region10: #{discriminator_forward.1} parent=5 // pred_check_branch
      %205 = sbr.rel (%p202) target = $region12
    $region11: #{discriminator_forward.1} parent=5 // pred_region
      %s206 = ssub.s32 %s14, 1
      // Predicated region
      $region13: #{discriminator_forward.1} parent=11 // pred_check
        %p207 = pneg %p61
      $region14: #{discriminator_forward.1} parent=11 // pred_check_branch
        %209 = sbr.rel (%p207) target = $region16
      $region15: #{discriminator_forward.1} parent=11 // pred_region
        _
      $region16: #{discriminator_forward.1} parent=11 // pred_fallthru
        _
      // Predicated region
      $region17: #{discriminator_forward.1} parent=11 // pred_check
        %p210 = pneg %p82
      $region18: #{discriminator_forward.1} parent=11 // pred_check_branch
        %212 = sbr.rel (%p210) target = $region20
      $region19: #{discriminator_forward.1} parent=11 // pred_region
        _
      $region20: #{discriminator_forward.1} parent=11 // pred_fallthru
        _
      // Predicated region
      $region21: #{discriminator_forward.1} parent=11 // pred_check
        %p213 = pneg %p103
      $region22: #{discriminator_forward.1} parent=11 // pred_check_branch
        %215 = sbr.rel (%p213) target = $region24
      $region23: #{discriminator_forward.1} parent=11 // pred_region
        _
      $region24: #{discriminator_forward.1} parent=11 // pred_fallthru
        _
      // Predicated region
      $region25: #{discriminator_forward.1} parent=11 // pred_check
        %p216 = pneg %p124
      $region26: #{discriminator_forward.1} parent=11 // pred_check_branch
        %218 = sbr.rel (%p216) target = $region28
      $region27: #{discriminator_forward.1} parent=11 // pred_region
        _
      $region28: #{discriminator_forward.1} parent=11 // pred_fallthru
        _
      // Predicated region
      $region29: #{discriminator_forward.1} parent=11 // pred_check
        %p219 = pneg %p145
      $region30: #{discriminator_forward.1} parent=11 // pred_check_branch
        %221 = sbr.rel (%p219) target = $region32
      $region31: #{discriminator_forward.1} parent=11 // pred_region
        _
      $region32: #{discriminator_forward.1} parent=11 // pred_fallthru
        _
      // Predicated region
      $region33: #{discriminator_forward.1} parent=11 // pred_check
        %p222 = pneg %p166
      $region34: #{discriminator_forward.1} parent=11 // pred_check_branch
        %224 = sbr.rel (%p222) target = $region36
      $region35: #{discriminator_forward.1} parent=11 // pred_region
        _
      $region36: #{discriminator_forward.1} parent=11 // pred_fallthru
        _
    $region12: #{discriminator_forward.1} parent=5 // pred_fallthru
      _
    %p225 = scmp.lt.s32.totalorder %s14, 2
    // Predicated region
    $region37: #{discriminator_forward.1} parent=5 // pred_check
      %p226 = pneg %p225
    $region38: #{discriminator_forward.1} parent=5 // pred_check_branch
      %228 = sbr.rel (%p226) target = $region40
    $region39: #{discriminator_forward.1} parent=5 // pred_region
      // Predicated region
      $region41: #{discriminator_forward.1} parent=39 // pred_check
        %p229 = pneg %p34
      $region42: #{discriminator_forward.1} parent=39 // pred_check_branch
        %231 = sbr.rel (%p229) target = $region44
      $region43: #{discriminator_forward.1} parent=39 // pred_region
        %s232 = smul.u32 32, %s14
        %p233 = scmp.lt.s32.totalorder %s232, 63
        %s234 = scalar_select %p233, %s232, 63
        %s235 = smul.addr %s234, 8
        %s236 = scalar_lea.vmem %s0, %s235
        %s237 = smul.u32 32, %s14
      $region44: #{discriminator_forward.1} parent=39 // pred_fallthru
        _
    $region40: #{discriminator_forward.1} parent=5 // pred_fallthru
      _
    %p238 = scmp.le.s32.totalorder 1, %s14
    %p239 = scmp.lt.s32.totalorder %s14, 3
    %p240 = pnand %p238, %p239
    %p241 = pneg %p240
    // Predicated region
    $region45: #{discriminator_forward.1} parent=5 // pred_check
      _
    $region46: #{discriminator_forward.1} parent=5 // pred_check_branch
      %243 = sbr.rel (%p240) target = $region48
    $region47: #{discriminator_forward.1} parent=5 // pred_region
      %s244 = ssub.s32 %s14, 1
      %s245 = smul.u32 32, %s19
      %p246 = scmp.lt.s32.totalorder %s245, 63
      %s247 = scalar_select %p246, %s245, 63
      %s248 = smul.addr %s247, 8
      %s249 = scalar_lea.vmem %s0, %s248
      %p250 = pneg %p40
      %p251 = pneg %p37
      %p252 = pneg %p61
      %p253 = pneg %p58
      %p254 = pneg %p82
      %p255 = pneg %p79
      %p256 = pneg %p103
      %p257 = pneg %p100
      %p258 = pneg %p124
      %p259 = pneg %p121
      %p260 = pneg %p145
      %p261 = pneg %p142
      %p262 = pneg %p166
      %p263 = pneg %p163
      %p264 = pneg %p192
      %p265 = pneg %p189
      %s266 = smul.u32 32, %s19
      %p267 = scmp.lt.s32.totalorder %s266, 63
      %s268 = scalar_select %p267, %s266, 63
      %s269 = smul.addr %s268, 8
      %s270 = scalar_lea.vmem %s7, %s269
      %s271 = smul.u32 32, %s19
      %p272 = scmp.lt.s32.totalorder %s271, 63
      %s273 = scalar_select %p272, %s271, 63
      %s274 = smul.addr %s273, 8
      %s275 = scalar_lea.vmem %s0, %s274
      %s276 = smul.u32 32, %s19
      %s277 = smul.u32 32, %s19
      %p278 = scmp.lt.s32.totalorder %s277, 63
      %s279 = scalar_select %p278, %s277, 63
      %s280 = smul.addr %s279, 8
      %s281 = scalar_lea.vmem %s7, %s280
      %s282 = smul.u32 32, %s19
      %v283 = vld [vmem:[%s275] sm:$0xff]
      %v284 = vld [vmem:[%s275 + $0x8] sm:$0xff]
      %v285 = vld [vmem:[%s275 + $0x10] sm:$0xff]
      %v286 = vld [vmem:[%s275 + $0x18] sm:$0xff]
      %v287 = vld [vmem:[%s275 + $0x20] sm:$0xff]
      %v288 = vld [vmem:[%s275 + $0x28] sm:$0xff]
      %v289 = vld [vmem:[%s275 + $0x30] sm:$0xff]
      %v290 = vld [vmem:[%s275 + $0x38] sm:$0xff]
      %v291 = vld [vmem:[%s275 + $0x40] sm:$0xff]
      %v292 = vld [vmem:[%s275 + $0x48] sm:$0xff]
      %v293 = vld [vmem:[%s275 + $0x50] sm:$0xff]
      %v294 = vld [vmem:[%s275 + $0x58] sm:$0xff]
      %v295 = vld [vmem:[%s275 + $0x60] sm:$0xff]
      %v296 = vld [vmem:[%s275 + $0x68] sm:$0xff]
      %v297 = vld [vmem:[%s275 + $0x70] sm:$0xff]
      %v298 = vld [vmem:[%s275 + $0x78] sm:$0xff]
      %v299 = vld [vmem:[%s275 + $0x80] sm:$0xff]
      %v300 = vld [vmem:[%s275 + $0x88] sm:$0xff]
      %v301 = vld [vmem:[%s275 + $0x90] sm:$0xff]
      %v302 = vld [vmem:[%s275 + $0x98] sm:$0xff]
      %v303 = vld [vmem:[%s275 + $0xa0] sm:$0xff]
      %v304 = vld [vmem:[%s275 + $0xa8] sm:$0xff]
      %v305 = vld [vmem:[%s275 + $0xb0] sm:$0xff]
      %v306 = vld [vmem:[%s275 + $0xb8] sm:$0xff]
      %v307 = vld [vmem:[%s275 + $0xc0] sm:$0xff]
      %v308 = vld [vmem:[%s275 + $0xc8] sm:$0xff]
      %v309 = vld [vmem:[%s275 + $0xd0] sm:$0xff]
      %v310 = vld [vmem:[%s275 + $0xd8] sm:$0xff]
      %v311 = vld [vmem:[%s275 + $0xe0] sm:$0xff]
      %v312 = vld [vmem:[%s275 + $0xe8] sm:$0xff]
      %v313 = vld [vmem:[%s275 + $0xf0] sm:$0xff]
      %v314 = vld [vmem:[%s275 + $0xf8] sm:$0xff]
      %v315 = vld [vmem:[%s1] sm:$0xff]
      %v316 = vld [vmem:[%s1 + $0x8] sm:$0xff]
      %v317 = vld [vmem:[%s1 + $0x10] sm:$0xff]
      %v318 = vld [vmem:[%s1 + $0x18] sm:$0xff]
      %v319 = vld [vmem:[%s1 + $0x20] sm:$0xff]
      %v320 = vld [vmem:[%s1 + $0x28] sm:$0xff]
      %v321 = vld [vmem:[%s2] sm:$0x1]
      %v323 = vlaneseq
      %v324 = vshrl.u32 %v323, 7
      %v325 = vsub.s32 0, %v324
      %v326 = vrot.slane %v321, %v325
      %vm328 = vcmask 392192
      %v330 = vsel %vm328, %v283, 0
      %v333 = vsel %vm328, %v284, 0
      %v336 = vsel %vm328, %v285, 0
      %v339 = vsel %vm328, %v286, 0
      %v342 = vsel %vm328, %v287, 0
      %v345 = vsel %vm328, %v288, 0
      %v348 = vsel %vm328, %v289, 0
      %v351 = vsel %vm328, %v290, 0
      %v354 = vsel %vm328, %v291, 0
      %v357 = vsel %vm328, %v292, 0
      %v360 = vsel %vm328, %v293, 0
      %v363 = vsel %vm328, %v294, 0
      %v366 = vsel %vm328, %v295, 0
      %v369 = vsel %vm328, %v296, 0
      %v372 = vsel %vm328, %v297, 0
      %v375 = vsel %vm328, %v298, 0
      %v378 = vsel %vm328, %v299, 0
      %v381 = vsel %vm328, %v300, 0
      %v384 = vsel %vm328, %v301, 0
      %v387 = vsel %vm328, %v302, 0
      %v390 = vsel %vm328, %v303, 0
      %v393 = vsel %vm328, %v304, 0
      %v396 = vsel %vm328, %v305, 0
      %v399 = vsel %vm328, %v306, 0
      %v402 = vsel %vm328, %v307, 0
      %v405 = vsel %vm328, %v308, 0
      %v408 = vsel %vm328, %v309, 0
      %v411 = vsel %vm328, %v310, 0
      %v414 = vsel %vm328, %v311, 0
      %v417 = vsel %vm328, %v312, 0
      %v420 = vsel %vm328, %v313, 0
      %v423 = vsel %vm328, %v314, 0
      %425 = vmatprep.subr.mxu0 0.0
      %426 = vmatpush1.msra.mxu0 0.0
      %427 = vmatprep.subr.mxu0 0.0
      %428 = vmatpush1.msra.mxu0 0.0
      %429 = vmatprep.subr.mxu0 0.0
      %430 = vmatpush1.msra.mxu0 0.0
      %431 = vmatprep.subr.mxu0 0.0
      %432 = vmatpush1.msra.mxu0 0.0
      %433 = vmatprep.subr.mxu0 0.0
      %434 = vmatpush1.msra.mxu0 0.0
      %435 = vmatprep.subr.mxu0 0.0
      %436 = vmatpush1.msra.mxu0 0.0
      %437 = vmatprep.subr.mxu0 0.0
      %438 = vmatpush1.msra.mxu0 0.0
      %439 = vmatprep.subr.mxu0 0.0
      %440 = vmatpush1.msra.mxu0 0.0
      %441 = vmatprep.subr.mxu0 0.0
      %442 = vmatpush1.msra.mxu0 0.0
      %443 = vmatprep.subr.mxu0 0.0
      %444 = vmatpush1.msra.mxu0 0.0
      %445 = vmatprep.subr.mxu0 0.0
      %446 = vmatpush1.msra.mxu0 %v320
      %447 = vmatprep.subr.mxu0 0.0
      %448 = vmatpush1.msra.mxu0 %v319
      %449 = vmatprep.subr.mxu0 0.0
      %450 = vmatpush1.msra.mxu0 %v318
      %451 = vmatprep.subr.mxu0 0.0
      %452 = vmatpush1.msra.mxu0 %v317
      %453 = vmatprep.subr.mxu0 0.0
      %454 = vmatpush1.msra.mxu0 %v316
      %455 = vmatprep.subr.mxu0 0.0
      %456 = vmatpush1.msra.mxu0 %v315
      %457 = vmatprep.subr.mxu0 0.0
      %458 = vmatpush2.msra.mxu0 0.0
      %459 = vmatprep.subr.mxu0 0.0
      %460 = vmatpush2.msra.mxu0 0.0
      %461 = vmatprep.subr.mxu0 0.0
      %462 = vmatpush2.msra.mxu0 0.0
      %463 = vmatprep.subr.mxu0 0.0
      %464 = vmatpush2.msra.mxu0 0.0
      %465 = vmatprep.subr.mxu0 0.0
      %466 = vmatpush2.msra.mxu0 0.0
      %467 = vmatprep.subr.mxu0 0.0
      %468 = vmatpush2.msra.mxu0 0.0
      %469 = vmatprep.subr.mxu0 0.0
      %470 = vmatpush2.msra.mxu0 0.0
      %471 = vmatprep.subr.mxu0 0.0
      %472 = vmatpush2.msra.mxu0 0.0
      %473 = vmatprep.subr.mxu0 0.0
      %474 = vmatpush2.msra.mxu0 0.0
      %475 = vmatprep.subr.mxu0 0.0
      %476 = vmatpush2.msra.mxu0 0.0
      %477 = vmatprep.subr.mxu0 0.0
      %478 = vmatpush2.msra.mxu0 0.0
      %479 = vmatprep.subr.mxu0 0.0
      %480 = vmatpush2.msra.mxu0 0.0
      %481 = vmatprep.subr.mxu0 0.0
      %482 = vmatpush2.msra.mxu0 0.0
      %483 = vmatprep.subr.mxu0 0.0
      %484 = vmatpush2.msra.mxu0 0.0
      %485 = vmatprep.subr.mxu0 0.0
      %486 = vmatpush2.msra.mxu0 0.0
      %487 = vmatprep.subr.mxu0 0.0
      %488 = vmatpush2.msra.mxu0 0.0
      %489 = vmatprep.mubr.f32.mxu0 0.0
      %490 = vmatmul.mubr.f32.gmra.mxu0 %v330
      %v491 = vpop.f32.mrf.mxu0
      %v492 = vadd.f32 %v326, %v491
      %v493 = vpop.f32.mrf.mxu0
      %494 = vmatprep.mubr.f32.mxu0 0.0
      %495 = vmatmul.mubr.f32.gmra.mxu0 %v333
      %v496 = vpop.f32.mrf.mxu0
      %v497 = vadd.f32 %v326, %v496
      %v498 = vpop.f32.mrf.mxu0
      %499 = vmatprep.mubr.f32.mxu0 0.0
      %500 = vmatmul.mubr.f32.gmra.mxu0 %v336
      %v501 = vpop.f32.mrf.mxu0
      %v502 = vadd.f32 %v326, %v501
      %v503 = vpop.f32.mrf.mxu0
      %504 = vmatprep.mubr.f32.mxu0 0.0
      %505 = vmatmul.mubr.f32.gmra.mxu0 %v339
      %v506 = vpop.f32.mrf.mxu0
      %v507 = vadd.f32 %v326, %v506
      %v508 = vpop.f32.mrf.mxu0
      %509 = vmatprep.mubr.f32.mxu0 0.0
      %510 = vmatmul.mubr.f32.gmra.mxu0 %v342
      %v511 = vpop.f32.mrf.mxu0
      %v512 = vadd.f32 %v326, %v511
      %v513 = vpop.f32.mrf.mxu0
      %514 = vmatprep.mubr.f32.mxu0 0.0
      %515 = vmatmul.mubr.f32.gmra.mxu0 %v345
      %v516 = vpop.f32.mrf.mxu0
      %v517 = vadd.f32 %v326, %v516
      %v518 = vpop.f32.mrf.mxu0
      %519 = vmatprep.mubr.f32.mxu0 0.0
      %520 = vmatmul.mubr.f32.gmra.mxu0 %v348
      %v521 = vpop.f32.mrf.mxu0
      %v522 = vadd.f32 %v326, %v521
      %v523 = vpop.f32.mrf.mxu0
      %524 = vmatprep.mubr.f32.mxu0 0.0
      %525 = vmatmul.mubr.f32.gmra.mxu0 %v351
      %v526 = vpop.f32.mrf.mxu0
      %v527 = vadd.f32 %v326, %v526
      %v528 = vpop.f32.mrf.mxu0
      %529 = vmatprep.mubr.f32.mxu0 0.0
      %530 = vmatmul.mubr.f32.gmra.mxu0 %v354
      %v531 = vpop.f32.mrf.mxu0
      %v532 = vadd.f32 %v326, %v531
      %v533 = vpop.f32.mrf.mxu0
      %534 = vmatprep.mubr.f32.mxu0 0.0
      %535 = vmatmul.mubr.f32.gmra.mxu0 %v357
      %v536 = vpop.f32.mrf.mxu0
      %v537 = vadd.f32 %v326, %v536
      %v538 = vpop.f32.mrf.mxu0
      %539 = vmatprep.mubr.f32.mxu0 0.0
      %540 = vmatmul.mubr.f32.gmra.mxu0 %v360
      %v541 = vpop.f32.mrf.mxu0
      %v542 = vadd.f32 %v326, %v541
      %v543 = vpop.f32.mrf.mxu0
      %544 = vmatprep.mubr.f32.mxu0 0.0
      %545 = vmatmul.mubr.f32.gmra.mxu0 %v363
      %v546 = vpop.f32.mrf.mxu0
      %v547 = vadd.f32 %v326, %v546
      %v548 = vpop.f32.mrf.mxu0
      %549 = vmatprep.mubr.f32.mxu0 0.0
      %550 = vmatmul.mubr.f32.gmra.mxu0 %v366
      %v551 = vpop.f32.mrf.mxu0
      %v552 = vadd.f32 %v326, %v551
      %v553 = vpop.f32.mrf.mxu0
      %554 = vmatprep.mubr.f32.mxu0 0.0
      %555 = vmatmul.mubr.f32.gmra.mxu0 %v369
      %v556 = vpop.f32.mrf.mxu0
      %v557 = vadd.f32 %v326, %v556
      %v558 = vpop.f32.mrf.mxu0
      %559 = vmatprep.mubr.f32.mxu0 0.0
      %560 = vmatmul.mubr.f32.gmra.mxu0 %v372
      %v561 = vpop.f32.mrf.mxu0
      %v562 = vadd.f32 %v326, %v561
      %v563 = vpop.f32.mrf.mxu0
      %564 = vmatprep.mubr.f32.mxu0 0.0
      %565 = vmatmul.mubr.f32.gmra.mxu0 %v375
      %v566 = vpop.f32.mrf.mxu0
      %v567 = vadd.f32 %v326, %v566
      %v568 = vpop.f32.mrf.mxu0
      %569 = vmatprep.mubr.f32.mxu0 0.0
      %570 = vmatmul.mubr.f32.gmra.mxu0 %v378
      %v571 = vpop.f32.mrf.mxu0
      %v572 = vadd.f32 %v326, %v571
      %v573 = vpop.f32.mrf.mxu0
      %574 = vmatprep.mubr.f32.mxu0 0.0
      %575 = vmatmul.mubr.f32.gmra.mxu0 %v381
      %v576 = vpop.f32.mrf.mxu0
      %v577 = vadd.f32 %v326, %v576
      %v578 = vpop.f32.mrf.mxu0
      %579 = vmatprep.mubr.f32.mxu0 0.0
      %580 = vmatmul.mubr.f32.gmra.mxu0 %v384
      %v581 = vpop.f32.mrf.mxu0
      %v582 = vadd.f32 %v326, %v581
      %v583 = vpop.f32.mrf.mxu0
      %584 = vmatprep.mubr.f32.mxu0 0.0
      %585 = vmatmul.mubr.f32.gmra.mxu0 %v387
      %v586 = vpop.f32.mrf.mxu0
      %v587 = vadd.f32 %v326, %v586
      %v588 = vpop.f32.mrf.mxu0
      %589 = vmatprep.mubr.f32.mxu0 0.0
      %590 = vmatmul.mubr.f32.gmra.mxu0 %v390
      %v591 = vpop.f32.mrf.mxu0
      %v592 = vadd.f32 %v326, %v591
      %v593 = vpop.f32.mrf.mxu0
      %594 = vmatprep.mubr.f32.mxu0 0.0
      %595 = vmatmul.mubr.f32.gmra.mxu0 %v393
      %v596 = vpop.f32.mrf.mxu0
      %v597 = vadd.f32 %v326, %v596
      %v598 = vpop.f32.mrf.mxu0
      %599 = vmatprep.mubr.f32.mxu0 0.0
      %600 = vmatmul.mubr.f32.gmra.mxu0 %v396
      %v601 = vpop.f32.mrf.mxu0
      %v602 = vadd.f32 %v326, %v601
      %v603 = vpop.f32.mrf.mxu0
      %604 = vmatprep.mubr.f32.mxu0 0.0
      %605 = vmatmul.mubr.f32.gmra.mxu0 %v399
      %v606 = vpop.f32.mrf.mxu0
      %v607 = vadd.f32 %v326, %v606
      %v608 = vpop.f32.mrf.mxu0
      %609 = vmatprep.mubr.f32.mxu0 0.0
      %610 = vmatmul.mubr.f32.gmra.mxu0 %v402
      %v611 = vpop.f32.mrf.mxu0
      %v612 = vadd.f32 %v326, %v611
      %v613 = vpop.f32.mrf.mxu0
      %614 = vmatprep.mubr.f32.mxu0 0.0
      %615 = vmatmul.mubr.f32.gmra.mxu0 %v405
      %v616 = vpop.f32.mrf.mxu0
      %v617 = vadd.f32 %v326, %v616
      %v618 = vpop.f32.mrf.mxu0
      %619 = vmatprep.mubr.f32.mxu0 0.0
      %620 = vmatmul.mubr.f32.gmra.mxu0 %v408
      %v621 = vpop.f32.mrf.mxu0
      %v622 = vadd.f32 %v326, %v621
      %v623 = vpop.f32.mrf.mxu0
      %624 = vmatprep.mubr.f32.mxu0 0.0
      %625 = vmatmul.mubr.f32.gmra.mxu0 %v411
      %v626 = vpop.f32.mrf.mxu0
      %v627 = vadd.f32 %v326, %v626
      %v628 = vpop.f32.mrf.mxu0
      %629 = vmatprep.mubr.f32.mxu0 0.0
      %630 = vmatmul.mubr.f32.gmra.mxu0 %v414
      %v631 = vpop.f32.mrf.mxu0
      %v632 = vadd.f32 %v326, %v631
      %v633 = vpop.f32.mrf.mxu0
      %634 = vmatprep.mubr.f32.mxu0 0.0
      %635 = vmatmul.mubr.f32.gmra.mxu0 %v417
      %v636 = vpop.f32.mrf.mxu0
      %v637 = vadd.f32 %v326, %v636
      %v638 = vpop.f32.mrf.mxu0
      %639 = vmatprep.mubr.f32.mxu0 0.0
      %640 = vmatmul.mubr.f32.gmra.mxu0 %v420
      %v641 = vpop.f32.mrf.mxu0
      %v642 = vadd.f32 %v326, %v641
      %v643 = vpop.f32.mrf.mxu0
      %644 = vmatprep.mubr.f32.mxu0 0.0
      %645 = vmatmul.mubr.f32.gmra.mxu0 %v423
      %v646 = vpop.f32.mrf.mxu0
      %v647 = vadd.f32 %v326, %v646
      %v648 = vpop.f32.mrf.mxu0
      %649 = vdwg.mxu0
      %vm650 = vcmp.gt.f32.partialorder %v492, 0.0
      %vm651 = vcmp.gt.f32.partialorder %v497, 0.0
      %vm652 = vcmp.gt.f32.partialorder %v502, 0.0
      %vm653 = vcmp.gt.f32.partialorder %v507, 0.0
      %vm654 = vcmp.gt.f32.partialorder %v512, 0.0
      %vm655 = vcmp.gt.f32.partialorder %v517, 0.0
      %vm656 = vcmp.gt.f32.partialorder %v522, 0.0
      %vm657 = vcmp.gt.f32.partialorder %v527, 0.0
      %vm658 = vcmp.gt.f32.partialorder %v532, 0.0
      %vm659 = vcmp.gt.f32.partialorder %v537, 0.0
      %vm660 = vcmp.gt.f32.partialorder %v542, 0.0
      %vm661 = vcmp.gt.f32.partialorder %v547, 0.0
      %vm662 = vcmp.gt.f32.partialorder %v552, 0.0
      %vm663 = vcmp.gt.f32.partialorder %v557, 0.0
      %vm664 = vcmp.gt.f32.partialorder %v562, 0.0
      %vm665 = vcmp.gt.f32.partialorder %v567, 0.0
      %vm666 = vcmp.gt.f32.partialorder %v572, 0.0
      %vm667 = vcmp.gt.f32.partialorder %v577, 0.0
      %vm668 = vcmp.gt.f32.partialorder %v582, 0.0
      %vm669 = vcmp.gt.f32.partialorder %v587, 0.0
      %vm670 = vcmp.gt.f32.partialorder %v592, 0.0
      %vm671 = vcmp.gt.f32.partialorder %v597, 0.0
      %vm672 = vcmp.gt.f32.partialorder %v602, 0.0
      %vm673 = vcmp.gt.f32.partialorder %v607, 0.0
      %vm674 = vcmp.gt.f32.partialorder %v612, 0.0
      %vm675 = vcmp.gt.f32.partialorder %v617, 0.0
      %vm676 = vcmp.gt.f32.partialorder %v622, 0.0
      %vm677 = vcmp.gt.f32.partialorder %v627, 0.0
      %vm678 = vcmp.gt.f32.partialorder %v632, 0.0
      %vm679 = vcmp.gt.f32.partialorder %v637, 0.0
      %vm680 = vcmp.gt.f32.partialorder %v642, 0.0
      %vm681 = vcmp.gt.f32.partialorder %v647, 0.0
      %v682 = vmul.f32 %v492, 0.2
      %v683 = vmul.f32 %v497, 0.2
      %v684 = vmul.f32 %v502, 0.2
      %v685 = vmul.f32 %v507, 0.2
      %v686 = vmul.f32 %v512, 0.2
      %v687 = vmul.f32 %v517, 0.2
      %v688 = vmul.f32 %v522, 0.2
      %v689 = vmul.f32 %v527, 0.2
      %v690 = vmul.f32 %v532, 0.2
      %v691 = vmul.f32 %v537, 0.2
      %v692 = vmul.f32 %v542, 0.2
      %v693 = vmul.f32 %v547, 0.2
      %v694 = vmul.f32 %v552, 0.2
      %v695 = vmul.f32 %v557, 0.2
      %v696 = vmul.f32 %v562, 0.2
      %v697 = vmul.f32 %v567, 0.2
      %v698 = vmul.f32 %v572, 0.2
      %v699 = vmul.f32 %v577, 0.2
      %v700 = vmul.f32 %v582, 0.2
      %v701 = vmul.f32 %v587, 0.2
      %v702 = vmul.f32 %v592, 0.2
      %v703 = vmul.f32 %v597, 0.2
      %v704 = vmul.f32 %v602, 0.2
      %v705 = vmul.f32 %v607, 0.2
      %v706 = vmul.f32 %v612, 0.2
      %v707 = vmul.f32 %v617, 0.2
      %v708 = vmul.f32 %v622, 0.2
      %v709 = vmul.f32 %v627, 0.2
      %v710 = vmul.f32 %v632, 0.2
      %v711 = vmul.f32 %v637, 0.2
      %v712 = vmul.f32 %v642, 0.2
      %v713 = vmul.f32 %v647, 0.2
      %v714 = vsel %vm650, %v492, %v682
      %v715 = vsel %vm651, %v497, %v683
      %v716 = vsel %vm652, %v502, %v684
      %v717 = vsel %vm653, %v507, %v685
      %v718 = vsel %vm654, %v512, %v686
      %v719 = vsel %vm655, %v517, %v687
      %v720 = vsel %vm656, %v522, %v688
      %v721 = vsel %vm657, %v527, %v689
      %v722 = vsel %vm658, %v532, %v690
      %v723 = vsel %vm659, %v537, %v691
      %v724 = vsel %vm660, %v542, %v692
      %v725 = vsel %vm661, %v547, %v693
      %v726 = vsel %vm662, %v552, %v694
      %v727 = vsel %vm663, %v557, %v695
      %v728 = vsel %vm664, %v562, %v696
      %v729 = vsel %vm665, %v567, %v697
      %v730 = vsel %vm666, %v572, %v698
      %v731 = vsel %vm667, %v577, %v699
      %v732 = vsel %vm668, %v582, %v700
      %v733 = vsel %vm669, %v587, %v701
      %v734 = vsel %vm670, %v592, %v702
      %v735 = vsel %vm671, %v597, %v703
      %v736 = vsel %vm672, %v602, %v704
      %v737 = vsel %vm673, %v607, %v705
      %v738 = vsel %vm674, %v612, %v706
      %v739 = vsel %vm675, %v617, %v707
      %v740 = vsel %vm676, %v622, %v708
      %v741 = vsel %vm677, %v627, %v709
      %v742 = vsel %vm678, %v632, %v710
      %v743 = vsel %vm679, %v637, %v711
      %v744 = vsel %vm680, %v642, %v712
      %v745 = vsel %vm681, %v647, %v713
      %v746 = vld [vmem:[%s3] sm:$0xff]
      %v747 = vld [vmem:[%s3 + $0x8] sm:$0xff]
      %v748 = vld [vmem:[%s3 + $0x10] sm:$0xff]
      %v749 = vld [vmem:[%s3 + $0x18] sm:$0xff]
      %v750 = vld [vmem:[%s4] sm:$0x1]
      %v752 = vlaneseq
      %v753 = vshrl.u32 %v752, 7
      %v754 = vsub.s32 0, %v753
      %v755 = vrot.slane %v750, %v754
      %vm757 = vcmask 261120
      %v759 = vsel %vm757, %v714, 0
      %v762 = vsel %vm757, %v715, 0
      %v765 = vsel %vm757, %v716, 0
      %v768 = vsel %vm757, %v717, 0
      %v771 = vsel %vm757, %v718, 0
      %v774 = vsel %vm757, %v719, 0
      %v777 = vsel %vm757, %v720, 0
      %v780 = vsel %vm757, %v721, 0
      %v783 = vsel %vm757, %v722, 0
      %v786 = vsel %vm757, %v723, 0
      %v789 = vsel %vm757, %v724, 0
      %v792 = vsel %vm757, %v725, 0
      %v795 = vsel %vm757, %v726, 0
      %v798 = vsel %vm757, %v727, 0
      %v801 = vsel %vm757, %v728, 0
      %v804 = vsel %vm757, %v729, 0
      %v807 = vsel %vm757, %v730, 0
      %v810 = vsel %vm757, %v731, 0
      %v813 = vsel %vm757, %v732, 0
      %v816 = vsel %vm757, %v733, 0
      %v819 = vsel %vm757, %v734, 0
      %v822 = vsel %vm757, %v735, 0
      %v825 = vsel %vm757, %v736, 0
      %v828 = vsel %vm757, %v737, 0
      %v831 = vsel %vm757, %v738, 0
      %v834 = vsel %vm757, %v739, 0
      %v837 = vsel %vm757, %v740, 0
      %v840 = vsel %vm757, %v741, 0
      %v843 = vsel %vm757, %v742, 0
      %v846 = vsel %vm757, %v743, 0
      %v849 = vsel %vm757, %v744, 0
      %v852 = vsel %vm757, %v745, 0
      %854 = vmatprep.subr.mxu0 0.0
      %855 = vmatpush1.msra.mxu0 0.0
      %856 = vmatprep.subr.mxu0 0.0
      %857 = vmatpush1.msra.mxu0 0.0
      %858 = vmatprep.subr.mxu0 0.0
      %859 = vmatpush1.msra.mxu0 0.0
      %860 = vmatprep.subr.mxu0 0.0
      %861 = vmatpush1.msra.mxu0 0.0
      %862 = vmatprep.subr.mxu0 0.0
      %863 = vmatpush1.msra.mxu0 0.0
      %864 = vmatprep.subr.mxu0 0.0
      %865 = vmatpush1.msra.mxu0 0.0
      %866 = vmatprep.subr.mxu0 0.0
      %867 = vmatpush1.msra.mxu0 0.0
      %868 = vmatprep.subr.mxu0 0.0
      %869 = vmatpush1.msra.mxu0 0.0
      %870 = vmatprep.subr.mxu0 0.0
      %871 = vmatpush1.msra.mxu0 0.0
      %872 = vmatprep.subr.mxu0 0.0
      %873 = vmatpush1.msra.mxu0 0.0
      %874 = vmatprep.subr.mxu0 0.0
      %875 = vmatpush1.msra.mxu0 0.0
      %876 = vmatprep.subr.mxu0 0.0
      %877 = vmatpush1.msra.mxu0 0.0
      %878 = vmatprep.subr.mxu0 0.0
      %879 = vmatpush1.msra.mxu0 %v749
      %880 = vmatprep.subr.mxu0 0.0
      %881 = vmatpush1.msra.mxu0 %v748
      %882 = vmatprep.subr.mxu0 0.0
      %883 = vmatpush1.msra.mxu0 %v747
      %884 = vmatprep.subr.mxu0 0.0
      %885 = vmatpush1.msra.mxu0 %v746
      %886 = vmatprep.subr.mxu0 0.0
      %887 = vmatpush2.msra.mxu0 0.0
      %888 = vmatprep.subr.mxu0 0.0
      %889 = vmatpush2.msra.mxu0 0.0
      %890 = vmatprep.subr.mxu0 0.0
      %891 = vmatpush2.msra.mxu0 0.0
      %892 = vmatprep.subr.mxu0 0.0
      %893 = vmatpush2.msra.mxu0 0.0
      %894 = vmatprep.subr.mxu0 0.0
      %895 = vmatpush2.msra.mxu0 0.0
      %896 = vmatprep.subr.mxu0 0.0
      %897 = vmatpush2.msra.mxu0 0.0
      %898 = vmatprep.subr.mxu0 0.0
      %899 = vmatpush2.msra.mxu0 0.0
      %900 = vmatprep.subr.mxu0 0.0
      %901 = vmatpush2.msra.mxu0 0.0
      %902 = vmatprep.subr.mxu0 0.0
      %903 = vmatpush2.msra.mxu0 0.0
      %904 = vmatprep.subr.mxu0 0.0
      %905 = vmatpush2.msra.mxu0 0.0
      %906 = vmatprep.subr.mxu0 0.0
      %907 = vmatpush2.msra.mxu0 0.0
      %908 = vmatprep.subr.mxu0 0.0
      %909 = vmatpush2.msra.mxu0 0.0
      %910 = vmatprep.subr.mxu0 0.0
      %911 = vmatpush2.msra.mxu0 0.0
      %912 = vmatprep.subr.mxu0 0.0
      %913 = vmatpush2.msra.mxu0 0.0
      %914 = vmatprep.subr.mxu0 0.0
      %915 = vmatpush2.msra.mxu0 0.0
      %916 = vmatprep.subr.mxu0 0.0
      %917 = vmatpush2.msra.mxu0 0.0
      %918 = vmatprep.mubr.f32.mxu0 0.0
      %919 = vmatmul.mubr.f32.gmra.mxu0 %v759
      %v920 = vpop.f32.mrf.mxu0
      %v921 = vadd.f32 %v755, %v920
      %v922 = vpop.f32.mrf.mxu0
      %923 = vmatprep.mubr.f32.mxu0 0.0
      %924 = vmatmul.mubr.f32.gmra.mxu0 %v762
      %v925 = vpop.f32.mrf.mxu0
      %v926 = vadd.f32 %v755, %v925
      %v927 = vpop.f32.mrf.mxu0
      %928 = vmatprep.mubr.f32.mxu0 0.0
      %929 = vmatmul.mubr.f32.gmra.mxu0 %v765
      %v930 = vpop.f32.mrf.mxu0
      %v931 = vadd.f32 %v755, %v930
      %v932 = vpop.f32.mrf.mxu0
      %933 = vmatprep.mubr.f32.mxu0 0.0
      %934 = vmatmul.mubr.f32.gmra.mxu0 %v768
      %v935 = vpop.f32.mrf.mxu0
      %v936 = vadd.f32 %v755, %v935
      %v937 = vpop.f32.mrf.mxu0
      %938 = vmatprep.mubr.f32.mxu0 0.0
      %939 = vmatmul.mubr.f32.gmra.mxu0 %v771
      %v940 = vpop.f32.mrf.mxu0
      %v941 = vadd.f32 %v755, %v940
      %v942 = vpop.f32.mrf.mxu0
      %943 = vmatprep.mubr.f32.mxu0 0.0
      %944 = vmatmul.mubr.f32.gmra.mxu0 %v774
      %v945 = vpop.f32.mrf.mxu0
      %v946 = vadd.f32 %v755, %v945
      %v947 = vpop.f32.mrf.mxu0
      %948 = vmatprep.mubr.f32.mxu0 0.0
      %949 = vmatmul.mubr.f32.gmra.mxu0 %v777
      %v950 = vpop.f32.mrf.mxu0
      %v951 = vadd.f32 %v755, %v950
      %v952 = vpop.f32.mrf.mxu0
      %953 = vmatprep.mubr.f32.mxu0 0.0
      %954 = vmatmul.mubr.f32.gmra.mxu0 %v780
      %v955 = vpop.f32.mrf.mxu0
      %v956 = vadd.f32 %v755, %v955
      %v957 = vpop.f32.mrf.mxu0
      %958 = vmatprep.mubr.f32.mxu0 0.0
      %959 = vmatmul.mubr.f32.gmra.mxu0 %v783
      %v960 = vpop.f32.mrf.mxu0
      %v961 = vadd.f32 %v755, %v960
      %v962 = vpop.f32.mrf.mxu0
      %963 = vmatprep.mubr.f32.mxu0 0.0
      %964 = vmatmul.mubr.f32.gmra.mxu0 %v786
      %v965 = vpop.f32.mrf.mxu0
      %v966 = vadd.f32 %v755, %v965
      %v967 = vpop.f32.mrf.mxu0
      %968 = vmatprep.mubr.f32.mxu0 0.0
      %969 = vmatmul.mubr.f32.gmra.mxu0 %v789
      %v970 = vpop.f32.mrf.mxu0
      %v971 = vadd.f32 %v755, %v970
      %v972 = vpop.f32.mrf.mxu0
      %973 = vmatprep.mubr.f32.mxu0 0.0
      %974 = vmatmul.mubr.f32.gmra.mxu0 %v792
      %v975 = vpop.f32.mrf.mxu0
      %v976 = vadd.f32 %v755, %v975
      %v977 = vpop.f32.mrf.mxu0
      %978 = vmatprep.mubr.f32.mxu0 0.0
      %979 = vmatmul.mubr.f32.gmra.mxu0 %v795
      %v980 = vpop.f32.mrf.mxu0
      %v981 = vadd.f32 %v755, %v980
      %v982 = vpop.f32.mrf.mxu0
      %983 = vmatprep.mubr.f32.mxu0 0.0
      %984 = vmatmul.mubr.f32.gmra.mxu0 %v798
      %v985 = vpop.f32.mrf.mxu0
      %v986 = vadd.f32 %v755, %v985
      %v987 = vpop.f32.mrf.mxu0
      %988 = vmatprep.mubr.f32.mxu0 0.0
      %989 = vmatmul.mubr.f32.gmra.mxu0 %v801
      %v990 = vpop.f32.mrf.mxu0
      %v991 = vadd.f32 %v755, %v990
      %v992 = vpop.f32.mrf.mxu0
      %993 = vmatprep.mubr.f32.mxu0 0.0
      %994 = vmatmul.mubr.f32.gmra.mxu0 %v804
      %v995 = vpop.f32.mrf.mxu0
      %v996 = vadd.f32 %v755, %v995
      %v997 = vpop.f32.mrf.mxu0
      %998 = vmatprep.mubr.f32.mxu0 0.0
      %999 = vmatmul.mubr.f32.gmra.mxu0 %v807
      %v1000 = vpop.f32.mrf.mxu0
      %v1001 = vadd.f32 %v755, %v1000
      %v1002 = vpop.f32.mrf.mxu0
      %1003 = vmatprep.mubr.f32.mxu0 0.0
      %1004 = vmatmul.mubr.f32.gmra.mxu0 %v810
      %v1005 = vpop.f32.mrf.mxu0
      %v1006 = vadd.f32 %v755, %v1005
      %v1007 = vpop.f32.mrf.mxu0
      %1008 = vmatprep.mubr.f32.mxu0 0.0
      %1009 = vmatmul.mubr.f32.gmra.mxu0 %v813
      %v1010 = vpop.f32.mrf.mxu0
      %v1011 = vadd.f32 %v755, %v1010
      %v1012 = vpop.f32.mrf.mxu0
      %1013 = vmatprep.mubr.f32.mxu0 0.0
      %1014 = vmatmul.mubr.f32.gmra.mxu0 %v816
      %v1015 = vpop.f32.mrf.mxu0
      %v1016 = vadd.f32 %v755, %v1015
      %v1017 = vpop.f32.mrf.mxu0
      %1018 = vmatprep.mubr.f32.mxu0 0.0
      %1019 = vmatmul.mubr.f32.gmra.mxu0 %v819
      %v1020 = vpop.f32.mrf.mxu0
      %v1021 = vadd.f32 %v755, %v1020
      %v1022 = vpop.f32.mrf.mxu0
      %1023 = vmatprep.mubr.f32.mxu0 0.0
      %1024 = vmatmul.mubr.f32.gmra.mxu0 %v822
      %v1025 = vpop.f32.mrf.mxu0
      %v1026 = vadd.f32 %v755, %v1025
      %v1027 = vpop.f32.mrf.mxu0
      %1028 = vmatprep.mubr.f32.mxu0 0.0
      %1029 = vmatmul.mubr.f32.gmra.mxu0 %v825
      %v1030 = vpop.f32.mrf.mxu0
      %v1031 = vadd.f32 %v755, %v1030
      %v1032 = vpop.f32.mrf.mxu0
      %1033 = vmatprep.mubr.f32.mxu0 0.0
      %1034 = vmatmul.mubr.f32.gmra.mxu0 %v828
      %v1035 = vpop.f32.mrf.mxu0
      %v1036 = vadd.f32 %v755, %v1035
      %v1037 = vpop.f32.mrf.mxu0
      %1038 = vmatprep.mubr.f32.mxu0 0.0
      %1039 = vmatmul.mubr.f32.gmra.mxu0 %v831
      %v1040 = vpop.f32.mrf.mxu0
      %v1041 = vadd.f32 %v755, %v1040
      %v1042 = vpop.f32.mrf.mxu0
      %1043 = vmatprep.mubr.f32.mxu0 0.0
      %1044 = vmatmul.mubr.f32.gmra.mxu0 %v834
      %v1045 = vpop.f32.mrf.mxu0
      %v1046 = vadd.f32 %v755, %v1045
      %v1047 = vpop.f32.mrf.mxu0
      %1048 = vmatprep.mubr.f32.mxu0 0.0
      %1049 = vmatmul.mubr.f32.gmra.mxu0 %v837
      %v1050 = vpop.f32.mrf.mxu0
      %v1051 = vadd.f32 %v755, %v1050
      %v1052 = vpop.f32.mrf.mxu0
      %1053 = vmatprep.mubr.f32.mxu0 0.0
      %1054 = vmatmul.mubr.f32.gmra.mxu0 %v840
      %v1055 = vpop.f32.mrf.mxu0
      %v1056 = vadd.f32 %v755, %v1055
      %v1057 = vpop.f32.mrf.mxu0
      %1058 = vmatprep.mubr.f32.mxu0 0.0
      %1059 = vmatmul.mubr.f32.gmra.mxu0 %v843
      %v1060 = vpop.f32.mrf.mxu0
      %v1061 = vadd.f32 %v755, %v1060
      %v1062 = vpop.f32.mrf.mxu0
      %1063 = vmatprep.mubr.f32.mxu0 0.0
      %1064 = vmatmul.mubr.f32.gmra.mxu0 %v846
      %v1065 = vpop.f32.mrf.mxu0
      %v1066 = vadd.f32 %v755, %v1065
      %v1067 = vpop.f32.mrf.mxu0
      %1068 = vmatprep.mubr.f32.mxu0 0.0
      %1069 = vmatmul.mubr.f32.gmra.mxu0 %v849
      %v1070 = vpop.f32.mrf.mxu0
      %v1071 = vadd.f32 %v755, %v1070
      %v1072 = vpop.f32.mrf.mxu0
      %1073 = vmatprep.mubr.f32.mxu0 0.0
      %1074 = vmatmul.mubr.f32.gmra.mxu0 %v852
      %v1075 = vpop.f32.mrf.mxu0
      %v1076 = vadd.f32 %v755, %v1075
      %v1077 = vpop.f32.mrf.mxu0
      %1078 = vdwg.mxu0
      %vm1079 = vcmp.gt.f32.partialorder %v921, 0.0
      %vm1080 = vcmp.gt.f32.partialorder %v926, 0.0
      %vm1081 = vcmp.gt.f32.partialorder %v931, 0.0
      %vm1082 = vcmp.gt.f32.partialorder %v936, 0.0
      %vm1083 = vcmp.gt.f32.partialorder %v941, 0.0
      %vm1084 = vcmp.gt.f32.partialorder %v946, 0.0
      %vm1085 = vcmp.gt.f32.partialorder %v951, 0.0
      %vm1086 = vcmp.gt.f32.partialorder %v956, 0.0
      %vm1087 = vcmp.gt.f32.partialorder %v961, 0.0
      %vm1088 = vcmp.gt.f32.partialorder %v966, 0.0
      %vm1089 = vcmp.gt.f32.partialorder %v971, 0.0
      %vm1090 = vcmp.gt.f32.partialorder %v976, 0.0
      %vm1091 = vcmp.gt.f32.partialorder %v981, 0.0
      %vm1092 = vcmp.gt.f32.partialorder %v986, 0.0
      %vm1093 = vcmp.gt.f32.partialorder %v991, 0.0
      %vm1094 = vcmp.gt.f32.partialorder %v996, 0.0
      %vm1095 = vcmp.gt.f32.partialorder %v1001, 0.0
      %vm1096 = vcmp.gt.f32.partialorder %v1006, 0.0
      %vm1097 = vcmp.gt.f32.partialorder %v1011, 0.0
      %vm1098 = vcmp.gt.f32.partialorder %v1016, 0.0
      %vm1099 = vcmp.gt.f32.partialorder %v1021, 0.0
      %vm1100 = vcmp.gt.f32.partialorder %v1026, 0.0
      %vm1101 = vcmp.gt.f32.partialorder %v1031, 0.0
      %vm1102 = vcmp.gt.f32.partialorder %v1036, 0.0
      %vm1103 = vcmp.gt.f32.partialorder %v1041, 0.0
      %vm1104 = vcmp.gt.f32.partialorder %v1046, 0.0
      %vm1105 = vcmp.gt.f32.partialorder %v1051, 0.0
      %vm1106 = vcmp.gt.f32.partialorder %v1056, 0.0
      %vm1107 = vcmp.gt.f32.partialorder %v1061, 0.0
      %vm1108 = vcmp.gt.f32.partialorder %v1066, 0.0
      %vm1109 = vcmp.gt.f32.partialorder %v1071, 0.0
      %vm1110 = vcmp.gt.f32.partialorder %v1076, 0.0
      %v1111 = vmul.f32 %v921, 0.2
      %v1112 = vmul.f32 %v926, 0.2
      %v1113 = vmul.f32 %v931, 0.2
      %v1114 = vmul.f32 %v936, 0.2
      %v1115 = vmul.f32 %v941, 0.2
      %v1116 = vmul.f32 %v946, 0.2
      %v1117 = vmul.f32 %v951, 0.2
      %v1118 = vmul.f32 %v956, 0.2
      %v1119 = vmul.f32 %v961, 0.2
      %v1120 = vmul.f32 %v966, 0.2
      %v1121 = vmul.f32 %v971, 0.2
      %v1122 = vmul.f32 %v976, 0.2
      %v1123 = vmul.f32 %v981, 0.2
      %v1124 = vmul.f32 %v986, 0.2
      %v1125 = vmul.f32 %v991, 0.2
      %v1126 = vmul.f32 %v996, 0.2
      %v1127 = vmul.f32 %v1001, 0.2
      %v1128 = vmul.f32 %v1006, 0.2
      %v1129 = vmul.f32 %v1011, 0.2
      %v1130 = vmul.f32 %v1016, 0.2
      %v1131 = vmul.f32 %v1021, 0.2
      %v1132 = vmul.f32 %v1026, 0.2
      %v1133 = vmul.f32 %v1031, 0.2
      %v1134 = vmul.f32 %v1036, 0.2
      %v1135 = vmul.f32 %v1041, 0.2
      %v1136 = vmul.f32 %v1046, 0.2
      %v1137 = vmul.f32 %v1051, 0.2
      %v1138 = vmul.f32 %v1056, 0.2
      %v1139 = vmul.f32 %v1061, 0.2
      %v1140 = vmul.f32 %v1066, 0.2
      %v1141 = vmul.f32 %v1071, 0.2
      %v1142 = vmul.f32 %v1076, 0.2
      %v1143 = vsel %vm1079, %v921, %v1111
      %v1144 = vsel %vm1080, %v926, %v1112
      %v1145 = vsel %vm1081, %v931, %v1113
      %v1146 = vsel %vm1082, %v936, %v1114
      %v1147 = vsel %vm1083, %v941, %v1115
      %v1148 = vsel %vm1084, %v946, %v1116
      %v1149 = vsel %vm1085, %v951, %v1117
      %v1150 = vsel %vm1086, %v956, %v1118
      %v1151 = vsel %vm1087, %v961, %v1119
      %v1152 = vsel %vm1088, %v966, %v1120
      %v1153 = vsel %vm1089, %v971, %v1121
      %v1154 = vsel %vm1090, %v976, %v1122
      %v1155 = vsel %vm1091, %v981, %v1123
      %v1156 = vsel %vm1092, %v986, %v1124
      %v1157 = vsel %vm1093, %v991, %v1125
      %v1158 = vsel %vm1094, %v996, %v1126
      %v1159 = vsel %vm1095, %v1001, %v1127
      %v1160 = vsel %vm1096, %v1006, %v1128
      %v1161 = vsel %vm1097, %v1011, %v1129
      %v1162 = vsel %vm1098, %v1016, %v1130
      %v1163 = vsel %vm1099, %v1021, %v1131
      %v1164 = vsel %vm1100, %v1026, %v1132
      %v1165 = vsel %vm1101, %v1031, %v1133
      %v1166 = vsel %vm1102, %v1036, %v1134
      %v1167 = vsel %vm1103, %v1041, %v1135
      %v1168 = vsel %vm1104, %v1046, %v1136
      %v1169 = vsel %vm1105, %v1051, %v1137
      %v1170 = vsel %vm1106, %v1056, %v1138
      %v1171 = vsel %vm1107, %v1061, %v1139
      %v1172 = vsel %vm1108, %v1066, %v1140
      %v1173 = vsel %vm1109, %v1071, %v1141
      %v1174 = vsel %vm1110, %v1076, %v1142
      %v1175 = vld [vmem:[%s5] sm:$0xff]
      %v1176 = vld [vmem:[%s5 + $0x8] sm:$0xff]
      %s1177 = sld [smem:[#allocation2]]
      %v1178 = vstv %s1177
      %vm1179 = vcmask 130048
      %v1181 = vsel %vm1179, %v1143, 0
      %v1184 = vsel %vm1179, %v1144, 0
      %v1187 = vsel %vm1179, %v1145, 0
      %v1190 = vsel %vm1179, %v1146, 0
      %v1193 = vsel %vm1179, %v1147, 0
      %v1196 = vsel %vm1179, %v1148, 0
      %v1199 = vsel %vm1179, %v1149, 0
      %v1202 = vsel %vm1179, %v1150, 0
      %v1205 = vsel %vm1179, %v1151, 0
      %v1208 = vsel %vm1179, %v1152, 0
      %v1211 = vsel %vm1179, %v1153, 0
      %v1214 = vsel %vm1179, %v1154, 0
      %v1217 = vsel %vm1179, %v1155, 0
      %v1220 = vsel %vm1179, %v1156, 0
      %v1223 = vsel %vm1179, %v1157, 0
      %v1226 = vsel %vm1179, %v1158, 0
      %v1229 = vsel %vm1179, %v1159, 0
      %v1232 = vsel %vm1179, %v1160, 0
      %v1235 = vsel %vm1179, %v1161, 0
      %v1238 = vsel %vm1179, %v1162, 0
      %v1241 = vsel %vm1179, %v1163, 0
      %v1244 = vsel %vm1179, %v1164, 0
      %v1247 = vsel %vm1179, %v1165, 0
      %v1250 = vsel %vm1179, %v1166, 0
      %v1253 = vsel %vm1179, %v1167, 0
      %v1256 = vsel %vm1179, %v1168, 0
      %v1259 = vsel %vm1179, %v1169, 0
      %v1262 = vsel %vm1179, %v1170, 0
      %v1265 = vsel %vm1179, %v1171, 0
      %v1268 = vsel %vm1179, %v1172, 0
      %v1271 = vsel %vm1179, %v1173, 0
      %v1274 = vsel %vm1179, %v1174, 0
      %1276 = vmatprep.subr.mxu0 0.0
      %1277 = vmatpush1.msra.mxu0 0.0
      %1278 = vmatprep.subr.mxu0 0.0
      %1279 = vmatpush1.msra.mxu0 0.0
      %1280 = vmatprep.subr.mxu0 0.0
      %1281 = vmatpush1.msra.mxu0 0.0
      %1282 = vmatprep.subr.mxu0 0.0
      %1283 = vmatpush1.msra.mxu0 0.0
      %1284 = vmatprep.subr.mxu0 0.0
      %1285 = vmatpush1.msra.mxu0 0.0
      %1286 = vmatprep.subr.mxu0 0.0
      %1287 = vmatpush1.msra.mxu0 0.0
      %1288 = vmatprep.subr.mxu0 0.0
      %1289 = vmatpush1.msra.mxu0 0.0
      %1290 = vmatprep.subr.mxu0 0.0
      %1291 = vmatpush1.msra.mxu0 0.0
      %1292 = vmatprep.subr.mxu0 0.0
      %1293 = vmatpush1.msra.mxu0 0.0
      %1294 = vmatprep.subr.mxu0 0.0
      %1295 = vmatpush1.msra.mxu0 0.0
      %1296 = vmatprep.subr.mxu0 0.0
      %1297 = vmatpush1.msra.mxu0 0.0
      %1298 = vmatprep.subr.mxu0 0.0
      %1299 = vmatpush1.msra.mxu0 0.0
      %1300 = vmatprep.subr.mxu0 0.0
      %1301 = vmatpush1.msra.mxu0 0.0
      %1302 = vmatprep.subr.mxu0 0.0
      %1303 = vmatpush1.msra.mxu0 0.0
      %1304 = vmatprep.subr.mxu0 0.0
      %1305 = vmatpush1.msra.mxu0 %v1176
      %1306 = vmatprep.subr.mxu0 0.0
      %1307 = vmatpush1.msra.mxu0 %v1175
      %1308 = vmatprep.subr.mxu0 0.0
      %1309 = vmatpush2.msra.mxu0 0.0
      %1310 = vmatprep.subr.mxu0 0.0
      %1311 = vmatpush2.msra.mxu0 0.0
      %1312 = vmatprep.subr.mxu0 0.0
      %1313 = vmatpush2.msra.mxu0 0.0
      %1314 = vmatprep.subr.mxu0 0.0
      %1315 = vmatpush2.msra.mxu0 0.0
      %1316 = vmatprep.subr.mxu0 0.0
      %1317 = vmatpush2.msra.mxu0 0.0
      %1318 = vmatprep.subr.mxu0 0.0
      %1319 = vmatpush2.msra.mxu0 0.0
      %1320 = vmatprep.subr.mxu0 0.0
      %1321 = vmatpush2.msra.mxu0 0.0
      %1322 = vmatprep.subr.mxu0 0.0
      %1323 = vmatpush2.msra.mxu0 0.0
      %1324 = vmatprep.subr.mxu0 0.0
      %1325 = vmatpush2.msra.mxu0 0.0
      %1326 = vmatprep.subr.mxu0 0.0
      %1327 = vmatpush2.msra.mxu0 0.0
      %1328 = vmatprep.subr.mxu0 0.0
      %1329 = vmatpush2.msra.mxu0 0.0
      %1330 = vmatprep.subr.mxu0 0.0
      %1331 = vmatpush2.msra.mxu0 0.0
      %1332 = vmatprep.subr.mxu0 0.0
      %1333 = vmatpush2.msra.mxu0 0.0
      %1334 = vmatprep.subr.mxu0 0.0
      %1335 = vmatpush2.msra.mxu0 0.0
      %1336 = vmatprep.subr.mxu0 0.0
      %1337 = vmatpush2.msra.mxu0 0.0
      %1338 = vmatprep.subr.mxu0 0.0
      %1339 = vmatpush2.msra.mxu0 0.0
      %1340 = vmatprep.mubr.f32.mxu0 0.0
      %1341 = vmatmul.mubr.f32.gmra.mxu0 %v1181
      %v1342 = vpop.f32.mrf.mxu0
      %v1343 = vadd.f32 %v1178, %v1342
      %v1344 = vpop.f32.mrf.mxu0
      %1345 = vmatprep.mubr.f32.mxu0 0.0
      %1346 = vmatmul.mubr.f32.gmra.mxu0 %v1184
      %v1347 = vpop.f32.mrf.mxu0
      %v1348 = vadd.f32 %v1178, %v1347
      %v1349 = vpop.f32.mrf.mxu0
      %1350 = vmatprep.mubr.f32.mxu0 0.0
      %1351 = vmatmul.mubr.f32.gmra.mxu0 %v1187
      %v1352 = vpop.f32.mrf.mxu0
      %v1353 = vadd.f32 %v1178, %v1352
      %v1354 = vpop.f32.mrf.mxu0
      %1355 = vmatprep.mubr.f32.mxu0 0.0
      %1356 = vmatmul.mubr.f32.gmra.mxu0 %v1190
      %v1357 = vpop.f32.mrf.mxu0
      %v1358 = vadd.f32 %v1178, %v1357
      %v1359 = vpop.f32.mrf.mxu0
      %1360 = vmatprep.mubr.f32.mxu0 0.0
      %1361 = vmatmul.mubr.f32.gmra.mxu0 %v1193
      %v1362 = vpop.f32.mrf.mxu0
      %v1363 = vadd.f32 %v1178, %v1362
      %v1364 = vpop.f32.mrf.mxu0
      %1365 = vmatprep.mubr.f32.mxu0 0.0
      %1366 = vmatmul.mubr.f32.gmra.mxu0 %v1196
      %v1367 = vpop.f32.mrf.mxu0
      %v1368 = vadd.f32 %v1178, %v1367
      %v1369 = vpop.f32.mrf.mxu0
      %1370 = vmatprep.mubr.f32.mxu0 0.0
      %1371 = vmatmul.mubr.f32.gmra.mxu0 %v1199
      %v1372 = vpop.f32.mrf.mxu0
      %v1373 = vadd.f32 %v1178, %v1372
      %v1374 = vpop.f32.mrf.mxu0
      %1375 = vmatprep.mubr.f32.mxu0 0.0
      %1376 = vmatmul.mubr.f32.gmra.mxu0 %v1202
      %v1377 = vpop.f32.mrf.mxu0
      %v1378 = vadd.f32 %v1178, %v1377
      %v1379 = vpop.f32.mrf.mxu0
      %1380 = vmatprep.mubr.f32.mxu0 0.0
      %1381 = vmatmul.mubr.f32.gmra.mxu0 %v1205
      %v1382 = vpop.f32.mrf.mxu0
      %v1383 = vadd.f32 %v1178, %v1382
      %v1384 = vpop.f32.mrf.mxu0
      %1385 = vmatprep.mubr.f32.mxu0 0.0
      %1386 = vmatmul.mubr.f32.gmra.mxu0 %v1208
      %v1387 = vpop.f32.mrf.mxu0
      %v1388 = vadd.f32 %v1178, %v1387
      %v1389 = vpop.f32.mrf.mxu0
      %1390 = vmatprep.mubr.f32.mxu0 0.0
      %1391 = vmatmul.mubr.f32.gmra.mxu0 %v1211
      %v1392 = vpop.f32.mrf.mxu0
      %v1393 = vadd.f32 %v1178, %v1392
      %v1394 = vpop.f32.mrf.mxu0
      %1395 = vmatprep.mubr.f32.mxu0 0.0
      %1396 = vmatmul.mubr.f32.gmra.mxu0 %v1214
      %v1397 = vpop.f32.mrf.mxu0
      %v1398 = vadd.f32 %v1178, %v1397
      %v1399 = vpop.f32.mrf.mxu0
      %1400 = vmatprep.mubr.f32.mxu0 0.0
      %1401 = vmatmul.mubr.f32.gmra.mxu0 %v1217
      %v1402 = vpop.f32.mrf.mxu0
      %v1403 = vadd.f32 %v1178, %v1402
      %v1404 = vpop.f32.mrf.mxu0
      %1405 = vmatprep.mubr.f32.mxu0 0.0
      %1406 = vmatmul.mubr.f32.gmra.mxu0 %v1220
      %v1407 = vpop.f32.mrf.mxu0
      %v1408 = vadd.f32 %v1178, %v1407
      %v1409 = vpop.f32.mrf.mxu0
      %1410 = vmatprep.mubr.f32.mxu0 0.0
      %1411 = vmatmul.mubr.f32.gmra.mxu0 %v1223
      %v1412 = vpop.f32.mrf.mxu0
      %v1413 = vadd.f32 %v1178, %v1412
      %v1414 = vpop.f32.mrf.mxu0
      %1415 = vmatprep.mubr.f32.mxu0 0.0
      %1416 = vmatmul.mubr.f32.gmra.mxu0 %v1226
      %v1417 = vpop.f32.mrf.mxu0
      %v1418 = vadd.f32 %v1178, %v1417
      %v1419 = vpop.f32.mrf.mxu0
      %1420 = vmatprep.mubr.f32.mxu0 0.0
      %1421 = vmatmul.mubr.f32.gmra.mxu0 %v1229
      %v1422 = vpop.f32.mrf.mxu0
      %v1423 = vadd.f32 %v1178, %v1422
      %v1424 = vpop.f32.mrf.mxu0
      %1425 = vmatprep.mubr.f32.mxu0 0.0
      %1426 = vmatmul.mubr.f32.gmra.mxu0 %v1232
      %v1427 = vpop.f32.mrf.mxu0
      %v1428 = vadd.f32 %v1178, %v1427
      %v1429 = vpop.f32.mrf.mxu0
      %1430 = vmatprep.mubr.f32.mxu0 0.0
      %1431 = vmatmul.mubr.f32.gmra.mxu0 %v1235
      %v1432 = vpop.f32.mrf.mxu0
      %v1433 = vadd.f32 %v1178, %v1432
      %v1434 = vpop.f32.mrf.mxu0
      %1435 = vmatprep.mubr.f32.mxu0 0.0
      %1436 = vmatmul.mubr.f32.gmra.mxu0 %v1238
      %v1437 = vpop.f32.mrf.mxu0
      %v1438 = vadd.f32 %v1178, %v1437
      %v1439 = vpop.f32.mrf.mxu0
      %1440 = vmatprep.mubr.f32.mxu0 0.0
      %1441 = vmatmul.mubr.f32.gmra.mxu0 %v1241
      %v1442 = vpop.f32.mrf.mxu0
      %v1443 = vadd.f32 %v1178, %v1442
      %v1444 = vpop.f32.mrf.mxu0
      %1445 = vmatprep.mubr.f32.mxu0 0.0
      %1446 = vmatmul.mubr.f32.gmra.mxu0 %v1244
      %v1447 = vpop.f32.mrf.mxu0
      %v1448 = vadd.f32 %v1178, %v1447
      %v1449 = vpop.f32.mrf.mxu0
      %1450 = vmatprep.mubr.f32.mxu0 0.0
      %1451 = vmatmul.mubr.f32.gmra.mxu0 %v1247
      %v1452 = vpop.f32.mrf.mxu0
      %v1453 = vadd.f32 %v1178, %v1452
      %v1454 = vpop.f32.mrf.mxu0
      %1455 = vmatprep.mubr.f32.mxu0 0.0
      %1456 = vmatmul.mubr.f32.gmra.mxu0 %v1250
      %v1457 = vpop.f32.mrf.mxu0
      %v1458 = vadd.f32 %v1178, %v1457
      %v1459 = vpop.f32.mrf.mxu0
      %1460 = vmatprep.mubr.f32.mxu0 0.0
      %1461 = vmatmul.mubr.f32.gmra.mxu0 %v1253
      %v1462 = vpop.f32.mrf.mxu0
      %v1463 = vadd.f32 %v1178, %v1462
      %v1464 = vpop.f32.mrf.mxu0
      %1465 = vmatprep.mubr.f32.mxu0 0.0
      %1466 = vmatmul.mubr.f32.gmra.mxu0 %v1256
      %v1467 = vpop.f32.mrf.mxu0
      %v1468 = vadd.f32 %v1178, %v1467
      %v1469 = vpop.f32.mrf.mxu0
      %1470 = vmatprep.mubr.f32.mxu0 0.0
      %1471 = vmatmul.mubr.f32.gmra.mxu0 %v1259
      %v1472 = vpop.f32.mrf.mxu0
      %v1473 = vadd.f32 %v1178, %v1472
      %v1474 = vpop.f32.mrf.mxu0
      %1475 = vmatprep.mubr.f32.mxu0 0.0
      %1476 = vmatmul.mubr.f32.gmra.mxu0 %v1262
      %v1477 = vpop.f32.mrf.mxu0
      %v1478 = vadd.f32 %v1178, %v1477
      %v1479 = vpop.f32.mrf.mxu0
      %1480 = vmatprep.mubr.f32.mxu0 0.0
      %1481 = vmatmul.mubr.f32.gmra.mxu0 %v1265
      %v1482 = vpop.f32.mrf.mxu0
      %v1483 = vadd.f32 %v1178, %v1482
      %v1484 = vpop.f32.mrf.mxu0
      %1485 = vmatprep.mubr.f32.mxu0 0.0
      %1486 = vmatmul.mubr.f32.gmra.mxu0 %v1268
      %v1487 = vpop.f32.mrf.mxu0
      %v1488 = vadd.f32 %v1178, %v1487
      %v1489 = vpop.f32.mrf.mxu0
      %1490 = vmatprep.mubr.f32.mxu0 0.0
      %1491 = vmatmul.mubr.f32.gmra.mxu0 %v1271
      %v1492 = vpop.f32.mrf.mxu0
      %v1493 = vadd.f32 %v1178, %v1492
      %v1494 = vpop.f32.mrf.mxu0
      %1495 = vmatprep.mubr.f32.mxu0 0.0
      %1496 = vmatmul.mubr.f32.gmra.mxu0 %v1274
      %v1497 = vpop.f32.mrf.mxu0
      %v1498 = vadd.f32 %v1178, %v1497
      %v1499 = vpop.f32.mrf.mxu0
      %1500 = vdwg.mxu0
      %vm1501 = vcmask 7168
      %1502 = vst.msk [vmem:[%s281] sm:$0xff] %vm1501, %v1343
      %1503 = vst.msk [vmem:[%s281 + $0x8] sm:$0xff] %vm1501, %v1348
      %1504 = vst.msk [vmem:[%s281 + $0x10] sm:$0xff] %vm1501, %v1353
      %1505 = vst.msk [vmem:[%s281 + $0x18] sm:$0xff] %vm1501, %v1358
      %1506 = vst.msk [vmem:[%s281 + $0x20] sm:$0xff] %vm1501, %v1363
      %1507 = vst.msk [vmem:[%s281 + $0x28] sm:$0xff] %vm1501, %v1368
      %1508 = vst.msk [vmem:[%s281 + $0x30] sm:$0xff] %vm1501, %v1373
      %1509 = vst.msk [vmem:[%s281 + $0x38] sm:$0xff] %vm1501, %v1378
      %1510 = vst.msk [vmem:[%s281 + $0x40] sm:$0xff] %vm1501, %v1383
      %1511 = vst.msk [vmem:[%s281 + $0x48] sm:$0xff] %vm1501, %v1388
      %1512 = vst.msk [vmem:[%s281 + $0x50] sm:$0xff] %vm1501, %v1393
      %1513 = vst.msk [vmem:[%s281 + $0x58] sm:$0xff] %vm1501, %v1398
      %1514 = vst.msk [vmem:[%s281 + $0x60] sm:$0xff] %vm1501, %v1403
      %1515 = vst.msk [vmem:[%s281 + $0x68] sm:$0xff] %vm1501, %v1408
      %1516 = vst.msk [vmem:[%s281 + $0x70] sm:$0xff] %vm1501, %v1413
      %1517 = vst.msk [vmem:[%s281 + $0x78] sm:$0xff] %vm1501, %v1418
      %1518 = vst.msk [vmem:[%s281 + $0x80] sm:$0xff] %vm1501, %v1423
      %1519 = vst.msk [vmem:[%s281 + $0x88] sm:$0xff] %vm1501, %v1428
      %1520 = vst.msk [vmem:[%s281 + $0x90] sm:$0xff] %vm1501, %v1433
      %1521 = vst.msk [vmem:[%s281 + $0x98] sm:$0xff] %vm1501, %v1438
      %1522 = vst.msk [vmem:[%s281 + $0xa0] sm:$0xff] %vm1501, %v1443
      %1523 = vst.msk [vmem:[%s281 + $0xa8] sm:$0xff] %vm1501, %v1448
      %1524 = vst.msk [vmem:[%s281 + $0xb0] sm:$0xff] %vm1501, %v1453
      %1525 = vst.msk [vmem:[%s281 + $0xb8] sm:$0xff] %vm1501, %v1458
      %1526 = vst.msk [vmem:[%s281 + $0xc0] sm:$0xff] %vm1501, %v1463
      %1527 = vst.msk [vmem:[%s281 + $0xc8] sm:$0xff] %vm1501, %v1468
      %1528 = vst.msk [vmem:[%s281 + $0xd0] sm:$0xff] %vm1501, %v1473
      %1529 = vst.msk [vmem:[%s281 + $0xd8] sm:$0xff] %vm1501, %v1478
      %1530 = vst.msk [vmem:[%s281 + $0xe0] sm:$0xff] %vm1501, %v1483
      %1531 = vst.msk [vmem:[%s281 + $0xe8] sm:$0xff] %vm1501, %v1488
      %1532 = vst.msk [vmem:[%s281 + $0xf0] sm:$0xff] %vm1501, %v1493
      %1533 = vst.msk [vmem:[%s281 + $0xf8] sm:$0xff] %vm1501, %v1498
      %s1534 = smul.u32 32, %s19
      %p1535 = scmp.lt.s32.totalorder %s1534, 63
      %s1536 = scalar_select %p1535, %s1534, 63
      %s1537 = smul.addr %s1536, 8
      %s1538 = scalar_lea.vmem %s7, %s1537
      // Predicated region
      $region49: #{discriminator_forward.1} parent=47 // pred_check
        %p1539 = pneg %p189
      $region50: #{discriminator_forward.1} parent=47 // pred_check_branch
        %1541 = sbr.rel (%p1539) target = $region52
      $region51: #{discriminator_forward.1} parent=47 // pred_region
        %s1542 = smul.u32 32, %s19
      $region52: #{discriminator_forward.1} parent=47 // pred_fallthru
        _
    $region48: #{discriminator_forward.1} parent=5 // pred_fallthru
      _
    %p1543 = scmp.le.s32.totalorder 2, %s14
    // Predicated region
    $region53: #{discriminator_forward.1} parent=5 // pred_check
      %p1544 = pneg %p1543
    $region54: #{discriminator_forward.1} parent=5 // pred_check_branch
      %1546 = sbr.rel (%p1544) target = $region56
    $region55: #{discriminator_forward.1} parent=5 // pred_region
      %s1547 = ssub.s32 %s14, 2
      // Predicated region
      $region57: #{discriminator_forward.1} parent=55 // pred_check
        %p1548 = pneg %p195
      $region58: #{discriminator_forward.1} parent=55 // pred_check_branch
        %1550 = sbr.rel (%p1548) target = $region60
      $region59: #{discriminator_forward.1} parent=55 // pred_region
        %s1551 = smul.u32 32, %s20
        %p1552 = scmp.lt.s32.totalorder %s1551, 63
        %s1553 = scalar_select %p1552, %s1551, 63
        %s1554 = smul.addr %s1553, 8
        %s1555 = scalar_lea.vmem %s7, %s1554
      $region60: #{discriminator_forward.1} parent=55 // pred_fallthru
        _
    $region56: #{discriminator_forward.1} parent=5 // pred_fallthru
      _
  $region6: #{discriminator_forward.1} parent=0 // loop_footer
    %s18 = sadd.s32 1, %s14
  $region7: #{discriminator_forward.1} parent=0 // loop_footer_branch
    %13 = sbr.rel target = $region3
  $region8: #{discriminator_forward.1} parent=0 // loop_exit
    _

</llo_original>
